<compile_context>
chip_gen: v7x
topology: tpu7x:2x2x1
jax: 0.10.0
libtpu: 0.0.40
codegen_flags: <defaults>
</compile_context>

<pallas_src>
import jax
import jax.numpy as jnp
from jax import lax
from jax.experimental import pallas as pl
from jax.experimental.pallas import tpu as pltpu

BN_EPS = 1e-5
LEAKY_SLOPE = 0.2


def _leaky(x):
    return jnp.where(x > 0, x, LEAKY_SLOPE * x)


def _round_up(x, m):
    return (x + m - 1) // m * m


# ----------------------------------------------------------------------------
# kernel
# ----------------------------------------------------------------------------
def lam_kernel(u_ref, v_ref, idx_ref, w2_ref, s2_ref, b2_ref, out_ref):
    N, Hp = u_ref.shape[1], u_ref.shape[2]
    tn, K = idx_ref.shape[1], idx_ref.shape[2]

    u_all = u_ref[0]                       # (N, Hp)  bf16, BN1-scale folded
    v_tile = v_ref[0]                      # (tn, Hp) f32,  BN1 scale+bias folded
    idx_tile = idx_ref[0]                  # (tn, K)  i32

    # --- stacked one-hot gather: one MXU call for all K neighbours ---
    cols = lax.broadcasted_iota(jnp.int32, (tn, N), 1)
    onehot = jnp.concatenate(
        [(cols == idx_tile[:, k:k + 1]).astype(jnp.bfloat16) for k in range(K)],
        axis=0)                                                    # (K*tn, N)
    g = jnp.dot(onehot, u_all, preferred_element_type=jnp.float32)  # (K*tn, Hp)

    # --- max over the K neighbours (static sublane slices, K-1 VPU maxes) ---
    gmax = g[0:tn]
    for k in range(1, K):
        gmax = jnp.maximum(gmax, g[k * tn:(k + 1) * tn])           # (tn, Hp)

    # --- centre term + LeakyReLU once per point (monotone => commutes w/ max) ---
    h = _leaky(gmax + v_tile)                                      # (tn, Hp)

    # --- conv2 (1x1 Conv1d) + folded BN2 + LeakyReLU ---
    a = jnp.dot(h.astype(jnp.bfloat16), w2_ref[...],
                preferred_element_type=jnp.float32)                # (tn, Dp)
    out_ref[0] = _leaky(a * s2_ref[...] + b2_ref[...])


# ----------------------------------------------------------------------------
# wrapper
# ----------------------------------------------------------------------------
def lam_forward(x, idx, raw_params, *, tile_n=128, lane=128):
    """x: (B, N, D) f32, idx: (B, N, K) int32 neighbour indices in [0, N)."""
    B, N, D = x.shape
    K = idx.shape[-1]
    (conv1_w, bn1_g, bn1_b, bn1_rm, bn1_rv,
     conv2_w, bn2_g, bn2_b, bn2_rm, bn2_rv) = raw_params
    H = conv1_w.shape[0]

    tn = min(tile_n, N)
    assert N % tn == 0 and tn % 8 == 0, (N, tn)

    Dp = _round_up(D, lane)
    Hp = _round_up(H, lane)

    # ---- fold eval-mode BN into per-channel scale/bias ----
    s1 = bn1_g / jnp.sqrt(bn1_rv + BN_EPS)
    c1 = bn1_b - bn1_rm * s1
    s2 = bn2_g / jnp.sqrt(bn2_rv + BN_EPS)
    c2 = bn2_b - bn2_rm * s2

    w = conv1_w.reshape(H, 2 * D)            # [:, :D] on (nbr - ctr), [:, D:] on ctr
    w1a = w[:, :D].T * s1[None, :]           # (D, H): neighbour term, BN1 scale folded
    w1d = (w[:, D:] - w[:, :D]).T * s1[None, :]  # (D, H): centre term, BN1 scale folded
    w2 = conv2_w.reshape(D, H).T             # (H, D)

    # ---- u / v projections precomputed with plain XLA (tiny D->H matmuls) ----
    # Keeping these outside the kernel removes all serial state, so both grid
    # axes are parallel (v7x: point tiles shard across both TensorCores).
    xf = x.astype(jnp.float32)
    u = jnp.einsum('bnd,dh->bnh', xf, w1a)                 # (B, N, H)
    v = jnp.einsum('bnd,dh->bnh', xf, w1d) + c1            # (B, N, H)

    def padlast(a, to):
        return jnp.pad(a, [(0, 0)] * (a.ndim - 1) + [(0, to - a.shape[-1])])

    u_p = padlast(u, Hp).astype(jnp.bfloat16)              # gathered on MXU -> bf16
    v_p = padlast(v, Hp).astype(jnp.float32)               # epilogue stays f32
    w2_p = jnp.pad(w2, ((0, Hp - H), (0, Dp - D))).astype(jnp.bfloat16)
    s2_p = padlast(s2.reshape(1, D), Dp).astype(jnp.float32)
    c2_p = padlast(c2.reshape(1, D), Dp).astype(jnp.float32)
    idx = idx.astype(jnp.int32)

    in_specs = [
        pl.BlockSpec((1, N, Hp), lambda b, t: (b, 0, 0)),   # u: full batch row, const over t
        pl.BlockSpec((1, tn, Hp), lambda b, t: (b, t, 0)),  # v tile
        pl.BlockSpec((1, tn, K), lambda b, t: (b, t, 0)),   # idx tile
        pl.BlockSpec((Hp, Dp), lambda b, t: (0, 0)),        # w2
        pl.BlockSpec((1, Dp), lambda b, t: (0, 0)),         # s2
        pl.BlockSpec((1, Dp), lambda b, t: (0, 0)),         # c2
    ]

    flops = int(B * (2 * K * N * N * Hp        # fused one-hot gather matmul
                     + 2 * N * Hp * Dp))       # conv2
    bytes_accessed = int(u_p.size * 2 + v_p.size * 4 + idx.size * 4
                         + w2_p.size * 2 + (s2_p.size + c2_p.size) * 4
                         + B * N * Dp * 4)

    out = pl.pallas_call(
        lam_kernel,
        out_shape=jax.ShapeDtypeStruct((B, N, Dp), jnp.float32),
        grid=(B, N // tn),
        in_specs=in_specs,
        out_specs=pl.BlockSpec((1, tn, Dp), lambda b, t: (b, t, 0)),
        compiler_params=pltpu.CompilerParams(
            dimension_semantics=("parallel", "parallel"),
            vmem_limit_bytes=32 * 1024 * 1024),
        cost_estimate=pl.CostEstimate(flops=flops, transcendentals=0,
                                      bytes_accessed=bytes_accessed),
    )(u_p, v_p, idx, w2_p, s2_p, c2_p)

    # Lane-dense padded output; slice back to D for the caller.  Downstream
    # consumers that tolerate padded channels can take `out` directly.
    return out[:, :, :D]


# ----------------------------------------------------------------------------
# pure-JAX reference (direct f32 translation of the PyTorch forward, eval BN)
# ----------------------------------------------------------------------------
def lam_ref(x, idx, raw_params):
    (conv1_w, bn1_g, bn1_b, bn1_rm, bn1_rv,
     conv2_w, bn2_g, bn2_b, bn2_rm, bn2_rv) = raw_params
    B, N, D = x.shape
    H = conv1_w.shape[0]
    nbr = jax.vmap(lambda xb, ib: xb[ib])(x, idx)             # (B, N, K, D)
    ctr = jnp.broadcast_to(x[:, :, None, :], nbr.shape)
    g = jnp.concatenate([nbr - ctr, ctr], axis=-1)            # (B, N, K, 2D)
    h = jnp.einsum('bnkc,hc->bnkh', g, conv1_w.reshape(H, 2 * D))
    h = (h - bn1_rm) / jnp.sqrt(bn1_rv + BN_EPS) * bn1_g + bn1_b
    h = jnp.where(h > 0, h, LEAKY_SLOPE * h)
    h = jnp.max(h, axis=2)                                    # (B, N, H)
    y = jnp.einsum('bnh,dh->bnd', h, conv2_w.reshape(D, H))
    y = (y - bn2_rm) / jnp.sqrt(bn2_rv + BN_EPS) * bn2_g + bn2_b
    return jnp.where(y > 0, y, LEAKY_SLOPE * y)


if __name__ == "__main__":
    B, N, D = 2, 256, 32            # batch, num points, dim
    downrate, K = 8, 4              # H = D // downrate = 4, gcn_k = 4
    H = D // downrate
    tile_n = 128                    # 2 point-tiles per batch row

    key = jax.random.PRNGKey(0)
    kx, ki, *kp = jax.random.split(key, 12)
    x = jax.random.normal(kx, (B, N, D), dtype=jnp.float32)
    idx = jax.random.randint(ki, (B, N, K), 0, N, dtype=jnp.int32)

    f32 = jnp.float32
    conv1_w = (0.1 * jax.random.normal(kp[0], (H, 2 * D))).astype(f32)
    bn1_g = (1.0 + 0.1 * jax.random.normal(kp[1], (H,))).astype(f32)
    bn1_b = (0.1 * jax.random.normal(kp[2], (H,))).astype(f32)
    bn1_rm = (0.1 * jax.random.normal(kp[3], (H,))).astype(f32)
    bn1_rv = jax.random.uniform(kp[4], (H,), minval=0.5, maxval=1.5).astype(f32)
    conv2_w = (0.1 * jax.random.normal(kp[5], (D, H))).astype(f32)
    bn2_g = (1.0 + 0.1 * jax.random.normal(kp[6], (D,))).astype(f32)
    bn2_b = (0.1 * jax.random.normal(kp[7], (D,))).astype(f32)
    bn2_rm = (0.1 * jax.random.normal(kp[8], (D,))).astype(f32)
    bn2_rv = jax.random.uniform(kp[9], (D,), minval=0.5, maxval=1.5).astype(f32)

    raw_params = (conv1_w, bn1_g, bn1_b, bn1_rm, bn1_rv,
                  conv2_w, bn2_g, bn2_b, bn2_rm, bn2_rv)

    lam = jax.jit(lambda x_, i_, p_: lam_forward(x_, i_, p_, tile_n=tile_n))
    out = jax.block_until_ready(lam(x, idx, raw_params))

    ref = lam_ref(x, idx, raw_params)
    assert out.shape == (B, N, D), out.shape
    err = float(jnp.max(jnp.abs(out - ref)))
    # bf16 MXU operands with f32 accumulation vs. pure-f32 reference.
    assert err < 2e-2, err
    print("KERNEL_OK")
</pallas_src>

<mosaic_0001>
module attributes {stable_mosaic.version = 11 : i64} {
  func.func @lam_kernel(%arg0: i32, %arg1: i32, %arg2: memref<1x256x128xbf16, #tpu.memory_space<vmem>>, %arg3: memref<1x128x128xf32, #tpu.memory_space<vmem>>, %arg4: memref<1x128x4xi32, #tpu.memory_space<vmem>>, %arg5: memref<128x128xbf16, #tpu.memory_space<vmem>>, %arg6: memref<1x128xf32, #tpu.memory_space<vmem>>, %arg7: memref<1x128xf32, #tpu.memory_space<vmem>>, %arg8: memref<1x128x128xf32, #tpu.memory_space<vmem>>) attributes {dimension_semantics = [#tpu.dimension_semantics<parallel>, #tpu.dimension_semantics<parallel>], iteration_bounds = array<i64: 2, 2>, scalar_prefetch = 0 : i64, scratch_operands = 0 : i64, tpu.core_type = #tpu.core_type<tc>, window_params = [{transform_indices = @transform_0, window_bounds = array<i64: 1, 256, 128>}, {transform_indices = @transform_1, window_bounds = array<i64: 1, 128, 128>}, {transform_indices = @transform_2, window_bounds = array<i64: 1, 128, 4>}, {pipeline_mode = #tpu.pipeline_mode<synchronous>, transform_indices = @transform_3, window_bounds = array<i64: 128, 128>}, {pipeline_mode = #tpu.pipeline_mode<synchronous>, transform_indices = @transform_4, window_bounds = array<i64: 1, 128>}, {pipeline_mode = #tpu.pipeline_mode<synchronous>, transform_indices = @transform_5, window_bounds = array<i64: 1, 128>}, {transform_indices = @transform_6, window_bounds = array<i64: 1, 128, 128>}]} {
    %c0 = arith.constant 0 : index
    %c0_0 = arith.constant 0 : index
    %c0_1 = arith.constant 0 : index
    %0 = vector.load %arg2[%c0, %c0_0, %c0_1] : memref<1x256x128xbf16, #tpu.memory_space<vmem>>, vector<1x256x128xbf16>
    %1 = vector.shape_cast %0 : vector<1x256x128xbf16> to vector<256x128xbf16>
    %c0_2 = arith.constant 0 : index
    %c0_3 = arith.constant 0 : index
    %c0_4 = arith.constant 0 : index
    %2 = vector.load %arg3[%c0_2, %c0_3, %c0_4] : memref<1x128x128xf32, #tpu.memory_space<vmem>>, vector<1x128x128xf32>
    %3 = vector.shape_cast %2 : vector<1x128x128xf32> to vector<128x128xf32>
    %c0_5 = arith.constant 0 : index
    %c0_6 = arith.constant 0 : index
    %c0_7 = arith.constant 0 : index
    %4 = vector.load %arg4[%c0_5, %c0_6, %c0_7] : memref<1x128x4xi32, #tpu.memory_space<vmem>>, vector<1x128x4xi32>
    %5 = vector.shape_cast %4 : vector<1x128x4xi32> to vector<128x4xi32>
    %6 = tpu.iota {dimensions = array<i32: 1>} : vector<128x256xi32>
    %7 = vector.extract_strided_slice %5 {offsets = [0, 0], sizes = [128, 1], strides = [1, 1]} : vector<128x4xi32> to vector<128x1xi32>
    %8 = vector.broadcast %7 : vector<128x1xi32> to vector<128x256xi32>
    %9 = arith.cmpi eq, %6, %8 : vector<128x256xi32>
    %10 = arith.extui %9 : vector<128x256xi1> to vector<128x256xi32>
    %11 = arith.sitofp %10 : vector<128x256xi32> to vector<128x256xf32>
    %12 = arith.truncf %11 : vector<128x256xf32> to vector<128x256xbf16>
    %13 = vector.extract_strided_slice %5 {offsets = [0, 1], sizes = [128, 1], strides = [1, 1]} : vector<128x4xi32> to vector<128x1xi32>
    %14 = vector.broadcast %13 : vector<128x1xi32> to vector<128x256xi32>
    %15 = arith.cmpi eq, %6, %14 : vector<128x256xi32>
    %16 = arith.extui %15 : vector<128x256xi1> to vector<128x256xi32>
    %17 = arith.sitofp %16 : vector<128x256xi32> to vector<128x256xf32>
    %18 = arith.truncf %17 : vector<128x256xf32> to vector<128x256xbf16>
    %19 = vector.extract_strided_slice %5 {offsets = [0, 2], sizes = [128, 1], strides = [1, 1]} : vector<128x4xi32> to vector<128x1xi32>
    %20 = vector.broadcast %19 : vector<128x1xi32> to vector<128x256xi32>
    %21 = arith.cmpi eq, %6, %20 : vector<128x256xi32>
    %22 = arith.extui %21 : vector<128x256xi1> to vector<128x256xi32>
    %23 = arith.sitofp %22 : vector<128x256xi32> to vector<128x256xf32>
    %24 = arith.truncf %23 : vector<128x256xf32> to vector<128x256xbf16>
    %25 = vector.extract_strided_slice %5 {offsets = [0, 3], sizes = [128, 1], strides = [1, 1]} : vector<128x4xi32> to vector<128x1xi32>
    %26 = vector.broadcast %25 : vector<128x1xi32> to vector<128x256xi32>
    %27 = arith.cmpi eq, %6, %26 : vector<128x256xi32>
    %28 = arith.extui %27 : vector<128x256xi1> to vector<128x256xi32>
    %29 = arith.sitofp %28 : vector<128x256xi32> to vector<128x256xf32>
    %30 = arith.truncf %29 : vector<128x256xf32> to vector<128x256xbf16>
    %31 = tpu.concatenate %12, %18, %24, %30 in 0 : vector<128x256xbf16>, vector<128x256xbf16>, vector<128x256xbf16>, vector<128x256xbf16> -> vector<512x256xbf16>
    %cst = arith.constant dense<0.000000e+00> : vector<512x128xf32>
    %32 = tpu.matmul %31, %1, %cst {dimension_numbers = #tpu.dot_dimension_numbers<[1], [0], [0], [1], [0, 0, 1, 1], [], []>} : vector<512x256xbf16>, vector<256x128xbf16>, vector<512x128xf32> -> vector<512x128xf32>
    %33 = vector.extract_strided_slice %32 {offsets = [0, 0], sizes = [128, 128], strides = [1, 1]} : vector<512x128xf32> to vector<128x128xf32>
    %34 = vector.extract_strided_slice %32 {offsets = [128, 0], sizes = [128, 128], strides = [1, 1]} : vector<512x128xf32> to vector<128x128xf32>
    %35 = arith.maximumf %33, %34 : vector<128x128xf32>
    %36 = vector.extract_strided_slice %32 {offsets = [256, 0], sizes = [128, 128], strides = [1, 1]} : vector<512x128xf32> to vector<128x128xf32>
    %37 = arith.maximumf %35, %36 : vector<128x128xf32>
    %38 = vector.extract_strided_slice %32 {offsets = [384, 0], sizes = [128, 128], strides = [1, 1]} : vector<512x128xf32> to vector<128x128xf32>
    %39 = arith.maximumf %37, %38 : vector<128x128xf32>
    %40 = arith.addf %39, %3 : vector<128x128xf32>
    %cst_8 = arith.constant 0.000000e+00 : f32
    %41 = vector.broadcast %cst_8 : f32 to vector<128x128xf32>
    %42 = arith.cmpf ogt, %40, %41 : vector<128x128xf32>
    %cst_9 = arith.constant 2.000000e-01 : f32
    %43 = vector.broadcast %cst_9 : f32 to vector<128x128xf32>
    %44 = arith.mulf %43, %40 : vector<128x128xf32>
    %45 = arith.select %42, %40, %44 : vector<128x128xi1>, vector<128x128xf32>
    %46 = arith.truncf %45 : vector<128x128xf32> to vector<128x128xbf16>
    %c0_10 = arith.constant 0 : index
    %c0_11 = arith.constant 0 : index
    %47 = vector.load %arg5[%c0_10, %c0_11] : memref<128x128xbf16, #tpu.memory_space<vmem>>, vector<128x128xbf16>
    %cst_12 = arith.constant dense<0.000000e+00> : vector<128x128xf32>
    %48 = tpu.matmul %46, %47, %cst_12 {dimension_numbers = #tpu.dot_dimension_numbers<[1], [0], [0], [1], [0, 0, 1, 1], [], []>} : vector<128x128xbf16>, vector<128x128xbf16>, vector<128x128xf32> -> vector<128x128xf32>
    %c0_13 = arith.constant 0 : index
    %c0_14 = arith.constant 0 : index
    %49 = vector.load %arg6[%c0_13, %c0_14] : memref<1x128xf32, #tpu.memory_space<vmem>>, vector<1x128xf32>
    %50 = vector.broadcast %49 : vector<1x128xf32> to vector<128x128xf32>
    %51 = arith.mulf %48, %50 : vector<128x128xf32>
    %c0_15 = arith.constant 0 : index
    %c0_16 = arith.constant 0 : index
    %52 = vector.load %arg7[%c0_15, %c0_16] : memref<1x128xf32, #tpu.memory_space<vmem>>, vector<1x128xf32>
    %53 = vector.broadcast %52 : vector<1x128xf32> to vector<128x128xf32>
    %54 = arith.addf %51, %53 : vector<128x128xf32>
    %cst_17 = arith.constant 0.000000e+00 : f32
    %55 = vector.broadcast %cst_17 : f32 to vector<128x128xf32>
    %56 = arith.cmpf ogt, %54, %55 : vector<128x128xf32>
    %cst_18 = arith.constant 2.000000e-01 : f32
    %57 = vector.broadcast %cst_18 : f32 to vector<128x128xf32>
    %58 = arith.mulf %57, %54 : vector<128x128xf32>
    %59 = arith.select %56, %54, %58 : vector<128x128xi1>, vector<128x128xf32>
    %c0_19 = arith.constant 0 : index
    %c0_20 = arith.constant 0 : index
    %c0_21 = arith.constant 0 : index
    %60 = vector.load %arg8[%c0_19, %c0_20, %c0_21] : memref<1x128x128xf32, #tpu.memory_space<vmem>>, vector<1x128x128xf32>
    %61 = vector.shape_cast %60 : vector<1x128x128xf32> to vector<128x128xf32>
    %62 = vector.shape_cast %59 : vector<128x128xf32> to vector<1x128x128xf32>
    tpu.vector_store %arg8[%c0_19, %c0_20, %c0_21], %62 {strides = array<i32>} : memref<1x128x128xf32, #tpu.memory_space<vmem>>, vector<1x128x128xf32>,
    return
  }
  func.func @transform_0(%arg0: i32, %arg1: i32) -> (i32, i32, i32) {
    %c0_i32 = arith.constant 0 : i32
    %c0_i32_0 = arith.constant 0 : i32
    %c0_i32_1 = arith.constant 0 : i32
    return %arg0, %c0_i32, %c0_i32_0 : i32, i32, i32
  }
  func.func @transform_1(%arg0: i32, %arg1: i32) -> (i32, i32, i32) {
    %c0_i32 = arith.constant 0 : i32
    %c0_i32_0 = arith.constant 0 : i32
    return %arg0, %arg1, %c0_i32 : i32, i32, i32
  }
  func.func @transform_2(%arg0: i32, %arg1: i32) -> (i32, i32, i32) {
    %c0_i32 = arith.constant 0 : i32
    %c0_i32_0 = arith.constant 0 : i32
    return %arg0, %arg1, %c0_i32 : i32, i32, i32
  }
  func.func @transform_3(%arg0: i32, %arg1: i32) -> (i32, i32) {
    %c0_i32 = arith.constant 0 : i32
    %c0_i32_0 = arith.constant 0 : i32
    %c0_i32_1 = arith.constant 0 : i32
    return %c0_i32, %c0_i32_0 : i32, i32
  }
  func.func @transform_4(%arg0: i32, %arg1: i32) -> (i32, i32) {
    %c0_i32 = arith.constant 0 : i32
    %c0_i32_0 = arith.constant 0 : i32
    %c0_i32_1 = arith.constant 0 : i32
    return %c0_i32, %c0_i32_0 : i32, i32
  }
  func.func @transform_5(%arg0: i32, %arg1: i32) -> (i32, i32) {
    %c0_i32 = arith.constant 0 : i32
    %c0_i32_0 = arith.constant 0 : i32
    %c0_i32_1 = arith.constant 0 : i32
    return %c0_i32, %c0_i32_0 : i32, i32
  }
  func.func @transform_6(%arg0: i32, %arg1: i32) -> (i32, i32, i32) {
    %c0_i32 = arith.constant 0 : i32
    %c0_i32_0 = arith.constant 0 : i32
    return %arg0, %arg1, %c0_i32 : i32, i32, i32
  }
}

</mosaic_0001>

<llo_original>
// kernel: _lambda_.1
$region0: #{_lambda_.1}
  #allocation0 [shape = 'u32[]', space=smem, size = 0x4, offset = 0x4, fixed_abs, tag = 'smem constant byte address 0x4 - core index']
  #allocation1 [shape = 'u32[144,128]{1,0:T(1,128)}', space=vmem, size = 0x12000, scoped, tag = 'internal scratch']
  %s0 = inlined_call_operand.vmem [shape: bf16[2,256,128], index: 0, kind: input, shape index: {}]
  %s1 = inlined_call_operand.vmem [shape: f32[2,256,128], index: 1, kind: input, shape index: {}]
  %s2 = inlined_call_operand.vmem [shape: s32[2,256,4], index: 2, kind: input, shape index: {}]
  %s3 = inlined_call_operand.vmem [shape: bf16[128,128], index: 3, kind: input, shape index: {}]
  %s4 = inlined_call_operand.vmem [shape: f32[1,128], index: 4, kind: input, shape index: {}]
  %s5 = inlined_call_operand.vmem [shape: f32[1,128], index: 5, kind: input, shape index: {}]
  %s6 = inlined_call_operand.vmem [shape: f32[2,256,128], index: 6, kind: output, shape index: {}]
  %s7 = sld [smem:[#allocation0]]
  $region57: #{_lambda_.1} parent=0
    _
  %s9 = ssub.s32 1, %s7
  %s10 = scalar_select 0, %s9, %s7
  loop: start=0, step=1, limit=6
  $region2: #{_lambda_.1} parent=0 // loop_pre_header
    _
  $region3: #{_lambda_.1} parent=0 // loop_header
    %s12 = sphi 0, %s16
    %p13 = scmp.ge.s32.totalorder %s12, 6
    %s19 = sphi 0, %s31
    %s20 = sphi 0, %s27
    %s21 = sphi 0, %s19
    %s22 = sphi 0, %s20
    %s23 = sphi 0, %s21
    %s24 = sphi 0, %s22
    %s34 = sphi 0, %s36
    %s37 = sphi 0, %s34
    %s38 = sphi 0, %s37
    %s54 = sphi 0, %s38
    %s62 = sphi 0, %s64
    %s65 = sphi 0, %s62
    %s66 = sphi 0, %s65
    %s82 = sphi 0, %s66
    %s90 = sphi 0, %s92
    %s93 = sphi 0, %s90
    %s94 = sphi 0, %s93
    %s110 = sphi 0, %s94
    %s114 = sphi 0, %s114
    %s116 = sphi 0, %s114
    %s117 = sphi 0, %s116
    %s131 = sphi 0, %s117
    %s135 = sphi 0, %s135
    %s137 = sphi 0, %s135
    %s138 = sphi 0, %s137
    %s152 = sphi 0, %s138
    %s156 = sphi 0, %s156
    %s158 = sphi 0, %s156
    %s159 = sphi 0, %s158
    %s173 = sphi 0, %s159
    %s181 = sphi 0, %s183
    %s184 = sphi 0, %s181
    %s185 = sphi 0, %s184
    %s201 = sphi 0, %s185
  $region4: #{_lambda_.1} parent=0 // loop_header_branch
    %15 = sbr.rel (%p13) target = $region8
  $region5: #{_lambda_.1} parent=0 // loop_body
    %s17 = ssub.s32 %s12, 1
    %s18 = ssub.s32 %s12, 2
    %s25 = sadd.s32 1, %s20
    %p26 = scmp.ge.s32.totalorder %s25, 2
    %s27 = scalar_select %p26, 0, %s25
    %s28 = sadd.s32 1, %s19
    %s29 = scalar_select %p26, %s28, %s19
    %p30 = scmp.ge.s32.totalorder %s29, 2
    %s31 = scalar_select %p30, 0, %s29
    %s32 = ssub.s32 %s19, %s31
    %p33 = scmp.eq.s32.totalorder %s32, 0
    %s35 = sadd.s32 %s34, 1
    %s36 = scalar_select %p33, %s34, %s35
    %p39 = pneg %p33
    %p40 = scmp.eq.s32.totalorder %s12, 3
    %p41 = por %p39, %p40
    %p42 = scmp.ne.s32.totalorder %s34, %s37
    %p43 = scmp.eq.s32.totalorder %s12, 0
    %p44 = por %p42, %p43
    %p45 = scmp.ne.s32.totalorder %s34, %s37
    %p46 = scmp.eq.s32.totalorder %s17, 3
    %p47 = por %p45, %p46
    %p48 = scmp.ne.s32.totalorder %s37, %s38
    %p49 = scmp.eq.s32.totalorder %s17, 0
    %p50 = por %p48, %p49
    %p51 = scmp.ne.s32.totalorder %s37, %s38
    %p52 = scmp.eq.s32.totalorder %s18, 3
    %p53 = por %p51, %p52
    %p55 = scmp.ne.s32.totalorder %s38, %s54
    %p56 = scmp.eq.s32.totalorder %s18, 0
    %p57 = por %p55, %p56
    %s58 = ssub.s32 %s19, %s31
    %s59 = ssub.s32 %s20, %s27
    %s60 = sor.u32 %s58, %s59
    %p61 = scmp.eq.s32.totalorder %s60, 0
    %s63 = sadd.s32 %s62, 1
    %s64 = scalar_select %p61, %s62, %s63
    %p67 = pneg %p61
    %p68 = scmp.eq.s32.totalorder %s12, 3
    %p69 = por %p67, %p68
    %p70 = scmp.ne.s32.totalorder %s62, %s65
    %p71 = scmp.eq.s32.totalorder %s12, 0
    %p72 = por %p70, %p71
    %p73 = scmp.ne.s32.totalorder %s62, %s65
    %p74 = scmp.eq.s32.totalorder %s17, 3
    %p75 = por %p73, %p74
    %p76 = scmp.ne.s32.totalorder %s65, %s66
    %p77 = scmp.eq.s32.totalorder %s17, 0
    %p78 = por %p76, %p77
    %p79 = scmp.ne.s32.totalorder %s65, %s66
    %p80 = scmp.eq.s32.totalorder %s18, 3
    %p81 = por %p79, %p80
    %p83 = scmp.ne.s32.totalorder %s66, %s82
    %p84 = scmp.eq.s32.totalorder %s18, 0
    %p85 = por %p83, %p84
    %s86 = ssub.s32 %s19, %s31
    %s87 = ssub.s32 %s20, %s27
    %s88 = sor.u32 %s86, %s87
    %p89 = scmp.eq.s32.totalorder %s88, 0
    %s91 = sadd.s32 %s90, 1
    %s92 = scalar_select %p89, %s90, %s91
    %p95 = pneg %p89
    %p96 = scmp.eq.s32.totalorder %s12, 3
    %p97 = por %p95, %p96
    %p98 = scmp.ne.s32.totalorder %s90, %s93
    %p99 = scmp.eq.s32.totalorder %s12, 0
    %p100 = por %p98, %p99
    %p101 = scmp.ne.s32.totalorder %s90, %s93
    %p102 = scmp.eq.s32.totalorder %s17, 3
    %p103 = por %p101, %p102
    %p104 = scmp.ne.s32.totalorder %s93, %s94
    %p105 = scmp.eq.s32.totalorder %s17, 0
    %p106 = por %p104, %p105
    %p107 = scmp.ne.s32.totalorder %s93, %s94
    %p108 = scmp.eq.s32.totalorder %s18, 3
    %p109 = por %p107, %p108
    %p111 = scmp.ne.s32.totalorder %s94, %s110
    %p112 = scmp.eq.s32.totalorder %s18, 0
    %p113 = por %p111, %p112
    %s115 = sadd.s32 %s114, 1
    %p118 = scmp.eq.s32.totalorder %s12, 3
    %p119 = scmp.ne.s32.totalorder %s114, %s116
    %p120 = scmp.eq.s32.totalorder %s12, 0
    %p121 = por %p119, %p120
    %p122 = scmp.ne.s32.totalorder %s114, %s116
    %p123 = scmp.eq.s32.totalorder %s17, 3
    %p124 = por %p122, %p123
    %p125 = scmp.ne.s32.totalorder %s116, %s117
    %p126 = scmp.eq.s32.totalorder %s17, 0
    %p127 = por %p125, %p126
    %p128 = scmp.ne.s32.totalorder %s116, %s117
    %p129 = scmp.eq.s32.totalorder %s18, 3
    %p130 = por %p128, %p129
    %p132 = scmp.ne.s32.totalorder %s117, %s131
    %p133 = scmp.eq.s32.totalorder %s18, 0
    %p134 = por %p132, %p133
    %s136 = sadd.s32 %s135, 1
    %p139 = scmp.eq.s32.totalorder %s12, 3
    %p140 = scmp.ne.s32.totalorder %s135, %s137
    %p141 = scmp.eq.s32.totalorder %s12, 0
    %p142 = por %p140, %p141
    %p143 = scmp.ne.s32.totalorder %s135, %s137
    %p144 = scmp.eq.s32.totalorder %s17, 3
    %p145 = por %p143, %p144
    %p146 = scmp.ne.s32.totalorder %s137, %s138
    %p147 = scmp.eq.s32.totalorder %s17, 0
    %p148 = por %p146, %p147
    %p149 = scmp.ne.s32.totalorder %s137, %s138
    %p150 = scmp.eq.s32.totalorder %s18, 3
    %p151 = por %p149, %p150
    %p153 = scmp.ne.s32.totalorder %s138, %s152
    %p154 = scmp.eq.s32.totalorder %s18, 0
    %p155 = por %p153, %p154
    %s157 = sadd.s32 %s156, 1
    %p160 = scmp.eq.s32.totalorder %s12, 3
    %p161 = scmp.ne.s32.totalorder %s156, %s158
    %p162 = scmp.eq.s32.totalorder %s12, 0
    %p163 = por %p161, %p162
    %p164 = scmp.ne.s32.totalorder %s156, %s158
    %p165 = scmp.eq.s32.totalorder %s17, 3
    %p166 = por %p164, %p165
    %p167 = scmp.ne.s32.totalorder %s158, %s159
    %p168 = scmp.eq.s32.totalorder %s17, 0
    %p169 = por %p167, %p168
    %p170 = scmp.ne.s32.totalorder %s158, %s159
    %p171 = scmp.eq.s32.totalorder %s18, 3
    %p172 = por %p170, %p171
    %p174 = scmp.ne.s32.totalorder %s159, %s173
    %p175 = scmp.eq.s32.totalorder %s18, 0
    %p176 = por %p174, %p175
    %s177 = ssub.s32 %s19, %s31
    %s178 = ssub.s32 %s20, %s27
    %s179 = sor.u32 %s177, %s178
    %p180 = scmp.eq.s32.totalorder %s179, 0
    %s182 = sadd.s32 %s181, 1
    %s183 = scalar_select %p180, %s181, %s182
    %p186 = pneg %p180
    %p187 = scmp.eq.s32.totalorder %s12, 3
    %p188 = por %p186, %p187
    %p189 = scmp.ne.s32.totalorder %s181, %s184
    %p190 = scmp.eq.s32.totalorder %s12, 0
    %p191 = por %p189, %p190
    %p192 = scmp.ne.s32.totalorder %s181, %s184
    %p193 = scmp.eq.s32.totalorder %s17, 3
    %p194 = por %p192, %p193
    %p195 = scmp.ne.s32.totalorder %s184, %s185
    %p196 = scmp.eq.s32.totalorder %s17, 0
    %p197 = por %p195, %p196
    %p198 = scmp.ne.s32.totalorder %s184, %s185
    %p199 = scmp.eq.s32.totalorder %s18, 3
    %p200 = por %p198, %p199
    %p202 = scmp.ne.s32.totalorder %s185, %s201
    %p203 = scmp.eq.s32.totalorder %s18, 0
    %p204 = por %p202, %p203
    %p205 = scmp.le.s32.totalorder 1, %s12
    %p206 = scmp.lt.s32.totalorder %s12, 5
    %p207 = pnand %p205, %p206
    %p208 = pneg %p207
    // Predicated region
    $region9: #{_lambda_.1} parent=5 // pred_check
      _
    $region10: #{_lambda_.1} parent=5 // pred_check_branch
      %210 = sbr.rel (%p207) target = $region12
    $region11: #{_lambda_.1} parent=5 // pred_region
      %s211 = ssub.s32 %s12, 1
      // Predicated region
      $region13: #{_lambda_.1} parent=11 // pred_check
        %p212 = pneg %p127
      $region14: #{_lambda_.1} parent=11 // pred_check_branch
        %214 = sbr.rel (%p212) target = $region16
      $region15: #{_lambda_.1} parent=11 // pred_region
        _
      $region16: #{_lambda_.1} parent=11 // pred_fallthru
        _
      // Predicated region
      $region17: #{_lambda_.1} parent=11 // pred_check
        %p215 = pneg %p148
      $region18: #{_lambda_.1} parent=11 // pred_check_branch
        %217 = sbr.rel (%p215) target = $region20
      $region19: #{_lambda_.1} parent=11 // pred_region
        _
      $region20: #{_lambda_.1} parent=11 // pred_fallthru
        _
      // Predicated region
      $region21: #{_lambda_.1} parent=11 // pred_check
        %p218 = pneg %p169
      $region22: #{_lambda_.1} parent=11 // pred_check_branch
        %220 = sbr.rel (%p218) target = $region24
      $region23: #{_lambda_.1} parent=11 // pred_region
        _
      $region24: #{_lambda_.1} parent=11 // pred_fallthru
        _
    $region12: #{_lambda_.1} parent=5 // pred_fallthru
      _
    %p221 = scmp.lt.s32.totalorder %s12, 4
    // Predicated region
    $region25: #{_lambda_.1} parent=5 // pred_check
      %p222 = pneg %p221
    $region26: #{_lambda_.1} parent=5 // pred_check_branch
      %224 = sbr.rel (%p222) target = $region28
    $region27: #{_lambda_.1} parent=5 // pred_region
      // Predicated region
      $region29: #{_lambda_.1} parent=27 // pred_check
        %p225 = pneg %p44
      $region30: #{_lambda_.1} parent=27 // pred_check_branch
        %227 = sbr.rel (%p225) target = $region32
      $region31: #{_lambda_.1} parent=27 // pred_region
        %p228 = scmp.lt.s32.totalorder %s19, 1
        %s229 = scalar_select %p228, %s19, 1
        %s230 = smul.addr %s229, 32
        %s231 = smul.addr %s230, 4
        %s232 = scalar_lea.vmem %s0, %s231
      $region32: #{_lambda_.1} parent=27 // pred_fallthru
        _
      // Predicated region
      $region33: #{_lambda_.1} parent=27 // pred_check
        %p233 = pneg %p72
      $region34: #{_lambda_.1} parent=27 // pred_check_branch
        %235 = sbr.rel (%p233) target = $region36
      $region35: #{_lambda_.1} parent=27 // pred_region
        %s236 = smul.u32 16, %s20
        %p237 = scmp.lt.s32.totalorder %s19, 1
        %s238 = scalar_select %p237, %s19, 1
        %p239 = scmp.lt.s32.totalorder %s236, 31
        %s240 = scalar_select %p239, %s236, 31
        %s241 = smul.addr %s238, 32
        %s242 = sadd.s32 %s240, %s241
        %s243 = smul.addr %s242, 8
        %s244 = scalar_lea.vmem %s1, %s243
        %s245 = smul.u32 16, %s20
      $region36: #{_lambda_.1} parent=27 // pred_fallthru
        _
      // Predicated region
      $region37: #{_lambda_.1} parent=27 // pred_check
        %p246 = pneg %p100
      $region38: #{_lambda_.1} parent=27 // pred_check_branch
        %248 = sbr.rel (%p246) target = $region40
      $region39: #{_lambda_.1} parent=27 // pred_region
        %s249 = smul.u32 16, %s20
        %p250 = scmp.lt.s32.totalorder %s19, 1
        %s251 = scalar_select %p250, %s19, 1
        %p252 = scmp.lt.s32.totalorder %s249, 31
        %s253 = scalar_select %p252, %s249, 31
        %s254 = smul.addr %s251, 32
        %s255 = sadd.s32 %s253, %s254
        %s256 = smul.addr %s255, 8
        %s257 = scalar_lea.vmem %s2, %s256
        %s258 = smul.u32 16, %s20
      $region40: #{_lambda_.1} parent=27 // pred_fallthru
        _
    $region28: #{_lambda_.1} parent=5 // pred_fallthru
      _
    %p259 = scmp.le.s32.totalorder 1, %s12
    %p260 = scmp.lt.s32.totalorder %s12, 5
    %p261 = pnand %p259, %p260
    %p262 = pneg %p261
    // Predicated region
    $region41: #{_lambda_.1} parent=5 // pred_check
      _
    $region42: #{_lambda_.1} parent=5 // pred_check_branch
      %264 = sbr.rel (%p261) target = $region44
    $region43: #{_lambda_.1} parent=5 // pred_region
      %s265 = ssub.s32 %s12, 1
      %p266 = scmp.lt.s32.totalorder %s21, 1
      %s267 = scalar_select %p266, %s21, 1
      %s268 = smul.addr %s267, 32
      %s269 = smul.addr %s268, 4
      %s270 = scalar_lea.vmem %s0, %s269
      %p271 = pneg %p50
      %p272 = pneg %p47
      %s273 = smul.u32 16, %s22
      %p274 = scmp.lt.s32.totalorder %s21, 1
      %s275 = scalar_select %p274, %s21, 1
      %p276 = scmp.lt.s32.totalorder %s273, 31
      %s277 = scalar_select %p276, %s273, 31
      %s278 = smul.addr %s275, 32
      %s279 = sadd.s32 %s277, %s278
      %s280 = smul.addr %s279, 8
      %s281 = scalar_lea.vmem %s1, %s280
      %p282 = pneg %p78
      %p283 = pneg %p75
      %s284 = smul.u32 16, %s22
      %p285 = scmp.lt.s32.totalorder %s21, 1
      %s286 = scalar_select %p285, %s21, 1
      %p287 = scmp.lt.s32.totalorder %s284, 31
      %s288 = scalar_select %p287, %s284, 31
      %s289 = smul.addr %s286, 32
      %s290 = sadd.s32 %s288, %s289
      %s291 = smul.addr %s290, 8
      %s292 = scalar_lea.vmem %s2, %s291
      %p293 = pneg %p106
      %p294 = pneg %p103
      %p295 = pneg %p127
      %p296 = pneg %p124
      %p297 = pneg %p148
      %p298 = pneg %p145
      %p299 = pneg %p169
      %p300 = pneg %p166
      %p301 = pneg %p197
      %p302 = pneg %p194
      %s303 = smul.u32 16, %s22
      %p304 = scmp.lt.s32.totalorder %s21, 1
      %s305 = scalar_select %p304, %s21, 1
      %p306 = scmp.lt.s32.totalorder %s303, 31
      %s307 = scalar_select %p306, %s303, 31
      %s308 = smul.addr %s305, 32
      %s309 = sadd.s32 %s307, %s308
      %s310 = smul.addr %s309, 8
      %s311 = scalar_lea.vmem %s6, %s310
      %p312 = scmp.lt.s32.totalorder %s21, 1
      %s313 = scalar_select %p312, %s21, 1
      %s314 = smul.addr %s313, 32
      %s315 = smul.addr %s314, 4
      %s316 = scalar_lea.vmem %s0, %s315
      %s317 = smul.u32 16, %s22
      %p318 = scmp.lt.s32.totalorder %s21, 1
      %s319 = scalar_select %p318, %s21, 1
      %p320 = scmp.lt.s32.totalorder %s317, 31
      %s321 = scalar_select %p320, %s317, 31
      %s322 = smul.addr %s319, 32
      %s323 = sadd.s32 %s321, %s322
      %s324 = smul.addr %s323, 8
      %s325 = scalar_lea.vmem %s1, %s324
      %s326 = smul.u32 16, %s22
      %s327 = smul.u32 16, %s22
      %p328 = scmp.lt.s32.totalorder %s21, 1
      %s329 = scalar_select %p328, %s21, 1
      %p330 = scmp.lt.s32.totalorder %s327, 31
      %s331 = scalar_select %p330, %s327, 31
      %s332 = smul.addr %s329, 32
      %s333 = sadd.s32 %s331, %s332
      %s334 = smul.addr %s333, 8
      %s335 = scalar_lea.vmem %s2, %s334
      %s336 = smul.u32 16, %s22
      %s337 = smul.u32 16, %s22
      %p338 = scmp.lt.s32.totalorder %s21, 1
      %s339 = scalar_select %p338, %s21, 1
      %p340 = scmp.lt.s32.totalorder %s337, 31
      %s341 = scalar_select %p340, %s337, 31
      %s342 = smul.addr %s339, 32
      %s343 = sadd.s32 %s341, %s342
      %s344 = smul.addr %s343, 8
      %s345 = scalar_lea.vmem %s6, %s344
      %s346 = smul.u32 16, %s22
      %v348 = vld [vmem:[%s316] sm:$0xf]
      %v349 = vld [vmem:[%s316 + $0x4] sm:$0xf]
      %v350 = vld [vmem:[%s316 + $0x8] sm:$0xf]
      %v351 = vld [vmem:[%s316 + $0xc] sm:$0xf]
      %v352 = vld [vmem:[%s316 + $0x10] sm:$0xf]
      %v353 = vld [vmem:[%s316 + $0x14] sm:$0xf]
      %v354 = vld [vmem:[%s316 + $0x18] sm:$0xf]
      %v355 = vld [vmem:[%s316 + $0x1c] sm:$0xf]
      %v356 = vld [vmem:[%s316 + $0x20] sm:$0xf]
      %v357 = vld [vmem:[%s316 + $0x24] sm:$0xf]
      %v358 = vld [vmem:[%s316 + $0x28] sm:$0xf]
      %v359 = vld [vmem:[%s316 + $0x2c] sm:$0xf]
      %v360 = vld [vmem:[%s316 + $0x30] sm:$0xf]
      %v361 = vld [vmem:[%s316 + $0x34] sm:$0xf]
      %v362 = vld [vmem:[%s316 + $0x38] sm:$0xf]
      %v363 = vld [vmem:[%s316 + $0x3c] sm:$0xf]
      %v364 = vld [vmem:[%s316 + $0x40] sm:$0xf]
      %v365 = vld [vmem:[%s316 + $0x44] sm:$0xf]
      %v366 = vld [vmem:[%s316 + $0x48] sm:$0xf]
      %v367 = vld [vmem:[%s316 + $0x4c] sm:$0xf]
      %v368 = vld [vmem:[%s316 + $0x50] sm:$0xf]
      %v369 = vld [vmem:[%s316 + $0x54] sm:$0xf]
      %v370 = vld [vmem:[%s316 + $0x58] sm:$0xf]
      %v371 = vld [vmem:[%s316 + $0x5c] sm:$0xf]
      %v372 = vld [vmem:[%s316 + $0x60] sm:$0xf]
      %v373 = vld [vmem:[%s316 + $0x64] sm:$0xf]
      %v374 = vld [vmem:[%s316 + $0x68] sm:$0xf]
      %v375 = vld [vmem:[%s316 + $0x6c] sm:$0xf]
      %v376 = vld [vmem:[%s316 + $0x70] sm:$0xf]
      %v377 = vld [vmem:[%s316 + $0x74] sm:$0xf]
      %v378 = vld [vmem:[%s316 + $0x78] sm:$0xf]
      %v379 = vld [vmem:[%s316 + $0x7c] sm:$0xf]
      %v380 = vld [vmem:[%s325] sm:$0xff]
      %v381 = vld [vmem:[%s325 + $0x8] sm:$0xff]
      %v382 = vld [vmem:[%s325 + $0x10] sm:$0xff]
      %v383 = vld [vmem:[%s325 + $0x18] sm:$0xff]
      %v384 = vld [vmem:[%s325 + $0x20] sm:$0xff]
      %v385 = vld [vmem:[%s325 + $0x28] sm:$0xff]
      %v386 = vld [vmem:[%s325 + $0x30] sm:$0xff]
      %v387 = vld [vmem:[%s325 + $0x38] sm:$0xff]
      %v388 = vld [vmem:[%s325 + $0x40] sm:$0xff]
      %v389 = vld [vmem:[%s325 + $0x48] sm:$0xff]
      %v390 = vld [vmem:[%s325 + $0x50] sm:$0xff]
      %v391 = vld [vmem:[%s325 + $0x58] sm:$0xff]
      %v392 = vld [vmem:[%s325 + $0x60] sm:$0xff]
      %v393 = vld [vmem:[%s325 + $0x68] sm:$0xff]
      %v394 = vld [vmem:[%s325 + $0x70] sm:$0xff]
      %v395 = vld [vmem:[%s325 + $0x78] sm:$0xff]
      %v396 = vld [vmem:[%s335] sm:$0xff]
      %v397 = vld [vmem:[%s335 + $0x8] sm:$0xff]
      %v398 = vld [vmem:[%s335 + $0x10] sm:$0xff]
      %v399 = vld [vmem:[%s335 + $0x18] sm:$0xff]
      %v400 = vld [vmem:[%s335 + $0x20] sm:$0xff]
      %v401 = vld [vmem:[%s335 + $0x28] sm:$0xff]
      %v402 = vld [vmem:[%s335 + $0x30] sm:$0xff]
      %v403 = vld [vmem:[%s335 + $0x38] sm:$0xff]
      %v404 = vld [vmem:[%s335 + $0x40] sm:$0xff]
      %v405 = vld [vmem:[%s335 + $0x48] sm:$0xff]
      %v406 = vld [vmem:[%s335 + $0x50] sm:$0xff]
      %v407 = vld [vmem:[%s335 + $0x58] sm:$0xff]
      %v408 = vld [vmem:[%s335 + $0x60] sm:$0xff]
      %v409 = vld [vmem:[%s335 + $0x68] sm:$0xff]
      %v410 = vld [vmem:[%s335 + $0x70] sm:$0xff]
      %v411 = vld [vmem:[%s335 + $0x78] sm:$0xff]
      %v412 = vlaneseq
      %v413 = vand.u32 %v412, 127
      %v414 = vadd.s32 %v413, 128
      %415 = vset.pattern.permute.xlu0 0
      %416 = vperm.xlu0 %415, %v396
      %v417 = vpop.permute.xlu0 %416
      %418 = vset.pattern.permute.xlu0 0
      %419 = vperm.xlu0 %418, %v397
      %v420 = vpop.permute.xlu0 %419
      %421 = vset.pattern.permute.xlu0 0
      %422 = vperm.xlu0 %421, %v398
      %v423 = vpop.permute.xlu0 %422
      %424 = vset.pattern.permute.xlu0 0
      %425 = vperm.xlu0 %424, %v399
      %v426 = vpop.permute.xlu0 %425
      %427 = vset.pattern.permute.xlu0 0
      %428 = vperm.xlu0 %427, %v400
      %v429 = vpop.permute.xlu0 %428
      %430 = vset.pattern.permute.xlu0 0
      %431 = vperm.xlu0 %430, %v401
      %v432 = vpop.permute.xlu0 %431
      %433 = vset.pattern.permute.xlu0 0
      %434 = vperm.xlu0 %433, %v402
      %v435 = vpop.permute.xlu0 %434
      %436 = vset.pattern.permute.xlu0 0
      %437 = vperm.xlu0 %436, %v403
      %v438 = vpop.permute.xlu0 %437
      %439 = vset.pattern.permute.xlu0 0
      %440 = vperm.xlu0 %439, %v404
      %v441 = vpop.permute.xlu0 %440
      %442 = vset.pattern.permute.xlu0 0
      %443 = vperm.xlu0 %442, %v405
      %v444 = vpop.permute.xlu0 %443
      %445 = vset.pattern.permute.xlu0 0
      %446 = vperm.xlu0 %445, %v406
      %v447 = vpop.permute.xlu0 %446
      %448 = vset.pattern.permute.xlu0 0
      %449 = vperm.xlu0 %448, %v407
      %v450 = vpop.permute.xlu0 %449
      %451 = vset.pattern.permute.xlu0 0
      %452 = vperm.xlu0 %451, %v408
      %v453 = vpop.permute.xlu0 %452
      %454 = vset.pattern.permute.xlu0 0
      %455 = vperm.xlu0 %454, %v409
      %v456 = vpop.permute.xlu0 %455
      %457 = vset.pattern.permute.xlu0 0
      %458 = vperm.xlu0 %457, %v410
      %v459 = vpop.permute.xlu0 %458
      %460 = vset.pattern.permute.xlu0 0
      %461 = vperm.xlu0 %460, %v411
      %v462 = vpop.permute.xlu0 %461
      %vm463 = vcmp.eq.s32.totalorder %v413, %v417
      %vm464 = vcmp.eq.s32.totalorder %v414, %v417
      %vm465 = vcmp.eq.s32.totalorder %v413, %v420
      %vm466 = vcmp.eq.s32.totalorder %v414, %v420
      %vm467 = vcmp.eq.s32.totalorder %v413, %v423
      %vm468 = vcmp.eq.s32.totalorder %v414, %v423
      %vm469 = vcmp.eq.s32.totalorder %v413, %v426
      %vm470 = vcmp.eq.s32.totalorder %v414, %v426
      %vm471 = vcmp.eq.s32.totalorder %v413, %v429
      %vm472 = vcmp.eq.s32.totalorder %v414, %v429
      %vm473 = vcmp.eq.s32.totalorder %v413, %v432
      %vm474 = vcmp.eq.s32.totalorder %v414, %v432
      %vm475 = vcmp.eq.s32.totalorder %v413, %v435
      %vm476 = vcmp.eq.s32.totalorder %v414, %v435
      %vm477 = vcmp.eq.s32.totalorder %v413, %v438
      %vm478 = vcmp.eq.s32.totalorder %v414, %v438
      %vm479 = vcmp.eq.s32.totalorder %v413, %v441
      %vm480 = vcmp.eq.s32.totalorder %v414, %v441
      %vm481 = vcmp.eq.s32.totalorder %v413, %v444
      %vm482 = vcmp.eq.s32.totalorder %v414, %v444
      %vm483 = vcmp.eq.s32.totalorder %v413, %v447
      %vm484 = vcmp.eq.s32.totalorder %v414, %v447
      %vm485 = vcmp.eq.s32.totalorder %v413, %v450
      %vm486 = vcmp.eq.s32.totalorder %v414, %v450
      %vm487 = vcmp.eq.s32.totalorder %v413, %v453
      %vm488 = vcmp.eq.s32.totalorder %v414, %v453
      %vm489 = vcmp.eq.s32.totalorder %v413, %v456
      %vm490 = vcmp.eq.s32.totalorder %v414, %v456
      %vm491 = vcmp.eq.s32.totalorder %v413, %v459
      %vm492 = vcmp.eq.s32.totalorder %v414, %v459
      %vm493 = vcmp.eq.s32.totalorder %v413, %v462
      %vm494 = vcmp.eq.s32.totalorder %v414, %v462
      %v495 = vsel %vm463, 1, 0
      %v496 = vsel %vm464, 1, 0
      %v497 = vsel %vm465, 1, 0
      %v498 = vsel %vm466, 1, 0
      %v499 = vsel %vm467, 1, 0
      %v500 = vsel %vm468, 1, 0
      %v501 = vsel %vm469, 1, 0
      %v502 = vsel %vm470, 1, 0
      %v503 = vsel %vm471, 1, 0
      %v504 = vsel %vm472, 1, 0
      %v505 = vsel %vm473, 1, 0
      %v506 = vsel %vm474, 1, 0
      %v507 = vsel %vm475, 1, 0
      %v508 = vsel %vm476, 1, 0
      %v509 = vsel %vm477, 1, 0
      %v510 = vsel %vm478, 1, 0
      %v511 = vsel %vm479, 1, 0
      %v512 = vsel %vm480, 1, 0
      %v513 = vsel %vm481, 1, 0
      %v514 = vsel %vm482, 1, 0
      %v515 = vsel %vm483, 1, 0
      %v516 = vsel %vm484, 1, 0
      %v517 = vsel %vm485, 1, 0
      %v518 = vsel %vm486, 1, 0
      %v519 = vsel %vm487, 1, 0
      %v520 = vsel %vm488, 1, 0
      %v521 = vsel %vm489, 1, 0
      %v522 = vsel %vm490, 1, 0
      %v523 = vsel %vm491, 1, 0
      %v524 = vsel %vm492, 1, 0
      %v525 = vsel %vm493, 1, 0
      %v526 = vsel %vm494, 1, 0
      %v527 = vcvt.s32.f32 %v495
      %v528 = vcvt.s32.f32 %v496
      %v529 = vcvt.s32.f32 %v497
      %v530 = vcvt.s32.f32 %v498
      %v531 = vcvt.s32.f32 %v499
      %v532 = vcvt.s32.f32 %v500
      %v533 = vcvt.s32.f32 %v501
      %v534 = vcvt.s32.f32 %v502
      %v535 = vcvt.s32.f32 %v503
      %v536 = vcvt.s32.f32 %v504
      %v537 = vcvt.s32.f32 %v505
      %v538 = vcvt.s32.f32 %v506
      %v539 = vcvt.s32.f32 %v507
      %v540 = vcvt.s32.f32 %v508
      %v541 = vcvt.s32.f32 %v509
      %v542 = vcvt.s32.f32 %v510
      %v543 = vcvt.s32.f32 %v511
      %v544 = vcvt.s32.f32 %v512
      %v545 = vcvt.s32.f32 %v513
      %v546 = vcvt.s32.f32 %v514
      %v547 = vcvt.s32.f32 %v515
      %v548 = vcvt.s32.f32 %v516
      %v549 = vcvt.s32.f32 %v517
      %v550 = vcvt.s32.f32 %v518
      %v551 = vcvt.s32.f32 %v519
      %v552 = vcvt.s32.f32 %v520
      %v553 = vcvt.s32.f32 %v521
      %v554 = vcvt.s32.f32 %v522
      %v555 = vcvt.s32.f32 %v523
      %v556 = vcvt.s32.f32 %v524
      %v557 = vcvt.s32.f32 %v525
      %v558 = vcvt.s32.f32 %v526
      %v559 = vpack.c.bf16 %v529, %v527
      %v560 = vpack.c.bf16 %v530, %v528
      %v561 = vpack.c.bf16 %v533, %v531
      %v562 = vpack.c.bf16 %v534, %v532
      %v563 = vpack.c.bf16 %v537, %v535
      %v564 = vpack.c.bf16 %v538, %v536
      %v565 = vpack.c.bf16 %v541, %v539
      %v566 = vpack.c.bf16 %v542, %v540
      %v567 = vpack.c.bf16 %v545, %v543
      %v568 = vpack.c.bf16 %v546, %v544
      %v569 = vpack.c.bf16 %v549, %v547
      %v570 = vpack.c.bf16 %v550, %v548
      %v571 = vpack.c.bf16 %v553, %v551
      %v572 = vpack.c.bf16 %v554, %v552
      %v573 = vpack.c.bf16 %v557, %v555
      %v574 = vpack.c.bf16 %v558, %v556
      %575 = vset.pattern.permute.xlu0 1
      %576 = vperm.xlu0 %575, %v396
      %v577 = vpop.permute.xlu0 %576
      %578 = vset.pattern.permute.xlu0 1
      %579 = vperm.xlu0 %578, %v397
      %v580 = vpop.permute.xlu0 %579
      %581 = vset.pattern.permute.xlu0 1
      %582 = vperm.xlu0 %581, %v398
      %v583 = vpop.permute.xlu0 %582
      %584 = vset.pattern.permute.xlu0 1
      %585 = vperm.xlu0 %584, %v399
      %v586 = vpop.permute.xlu0 %585
      %587 = vset.pattern.permute.xlu0 1
      %588 = vperm.xlu0 %587, %v400
      %v589 = vpop.permute.xlu0 %588
      %590 = vset.pattern.permute.xlu0 1
      %591 = vperm.xlu0 %590, %v401
      %v592 = vpop.permute.xlu0 %591
      %593 = vset.pattern.permute.xlu0 1
      %594 = vperm.xlu0 %593, %v402
      %v595 = vpop.permute.xlu0 %594
      %596 = vset.pattern.permute.xlu0 1
      %597 = vperm.xlu0 %596, %v403
      %v598 = vpop.permute.xlu0 %597
      %599 = vset.pattern.permute.xlu0 1
      %600 = vperm.xlu0 %599, %v404
      %v601 = vpop.permute.xlu0 %600
      %602 = vset.pattern.permute.xlu0 1
      %603 = vperm.xlu0 %602, %v405
      %v604 = vpop.permute.xlu0 %603
      %605 = vset.pattern.permute.xlu0 1
      %606 = vperm.xlu0 %605, %v406
      %v607 = vpop.permute.xlu0 %606
      %608 = vset.pattern.permute.xlu0 1
      %609 = vperm.xlu0 %608, %v407
      %v610 = vpop.permute.xlu0 %609
      %611 = vset.pattern.permute.xlu0 1
      %612 = vperm.xlu0 %611, %v408
      %v613 = vpop.permute.xlu0 %612
      %614 = vset.pattern.permute.xlu0 1
      %615 = vperm.xlu0 %614, %v409
      %v616 = vpop.permute.xlu0 %615
      %617 = vset.pattern.permute.xlu0 1
      %618 = vperm.xlu0 %617, %v410
      %v619 = vpop.permute.xlu0 %618
      %620 = vset.pattern.permute.xlu0 1
      %621 = vperm.xlu0 %620, %v411
      %v622 = vpop.permute.xlu0 %621
      %vm623 = vcmp.eq.s32.totalorder %v413, %v577
      %vm624 = vcmp.eq.s32.totalorder %v414, %v577
      %vm625 = vcmp.eq.s32.totalorder %v413, %v580
      %vm626 = vcmp.eq.s32.totalorder %v414, %v580
      %vm627 = vcmp.eq.s32.totalorder %v413, %v583
      %vm628 = vcmp.eq.s32.totalorder %v414, %v583
      %vm629 = vcmp.eq.s32.totalorder %v413, %v586
      %vm630 = vcmp.eq.s32.totalorder %v414, %v586
      %vm631 = vcmp.eq.s32.totalorder %v413, %v589
      %vm632 = vcmp.eq.s32.totalorder %v414, %v589
      %vm633 = vcmp.eq.s32.totalorder %v413, %v592
      %vm634 = vcmp.eq.s32.totalorder %v414, %v592
      %vm635 = vcmp.eq.s32.totalorder %v413, %v595
      %vm636 = vcmp.eq.s32.totalorder %v414, %v595
      %vm637 = vcmp.eq.s32.totalorder %v413, %v598
      %vm638 = vcmp.eq.s32.totalorder %v414, %v598
      %vm639 = vcmp.eq.s32.totalorder %v413, %v601
      %vm640 = vcmp.eq.s32.totalorder %v414, %v601
      %vm641 = vcmp.eq.s32.totalorder %v413, %v604
      %vm642 = vcmp.eq.s32.totalorder %v414, %v604
      %vm643 = vcmp.eq.s32.totalorder %v413, %v607
      %vm644 = vcmp.eq.s32.totalorder %v414, %v607
      %vm645 = vcmp.eq.s32.totalorder %v413, %v610
      %vm646 = vcmp.eq.s32.totalorder %v414, %v610
      %vm647 = vcmp.eq.s32.totalorder %v413, %v613
      %vm648 = vcmp.eq.s32.totalorder %v414, %v613
      %vm649 = vcmp.eq.s32.totalorder %v413, %v616
      %vm650 = vcmp.eq.s32.totalorder %v414, %v616
      %vm651 = vcmp.eq.s32.totalorder %v413, %v619
      %vm652 = vcmp.eq.s32.totalorder %v414, %v619
      %vm653 = vcmp.eq.s32.totalorder %v413, %v622
      %vm654 = vcmp.eq.s32.totalorder %v414, %v622
      %v655 = vsel %vm623, 1, 0
      %v656 = vsel %vm624, 1, 0
      %v657 = vsel %vm625, 1, 0
      %v658 = vsel %vm626, 1, 0
      %v659 = vsel %vm627, 1, 0
      %v660 = vsel %vm628, 1, 0
      %v661 = vsel %vm629, 1, 0
      %v662 = vsel %vm630, 1, 0
      %v663 = vsel %vm631, 1, 0
      %v664 = vsel %vm632, 1, 0
      %v665 = vsel %vm633, 1, 0
      %v666 = vsel %vm634, 1, 0
      %v667 = vsel %vm635, 1, 0
      %v668 = vsel %vm636, 1, 0
      %v669 = vsel %vm637, 1, 0
      %v670 = vsel %vm638, 1, 0
      %v671 = vsel %vm639, 1, 0
      %v672 = vsel %vm640, 1, 0
      %v673 = vsel %vm641, 1, 0
      %v674 = vsel %vm642, 1, 0
      %v675 = vsel %vm643, 1, 0
      %v676 = vsel %vm644, 1, 0
      %v677 = vsel %vm645, 1, 0
      %v678 = vsel %vm646, 1, 0
      %v679 = vsel %vm647, 1, 0
      %v680 = vsel %vm648, 1, 0
      %v681 = vsel %vm649, 1, 0
      %v682 = vsel %vm650, 1, 0
      %v683 = vsel %vm651, 1, 0
      %v684 = vsel %vm652, 1, 0
      %v685 = vsel %vm653, 1, 0
      %v686 = vsel %vm654, 1, 0
      %v687 = vcvt.s32.f32 %v655
      %v688 = vcvt.s32.f32 %v656
      %v689 = vcvt.s32.f32 %v657
      %v690 = vcvt.s32.f32 %v658
      %v691 = vcvt.s32.f32 %v659
      %v692 = vcvt.s32.f32 %v660
      %v693 = vcvt.s32.f32 %v661
      %v694 = vcvt.s32.f32 %v662
      %v695 = vcvt.s32.f32 %v663
      %v696 = vcvt.s32.f32 %v664
      %v697 = vcvt.s32.f32 %v665
      %v698 = vcvt.s32.f32 %v666
      %v699 = vcvt.s32.f32 %v667
      %v700 = vcvt.s32.f32 %v668
      %v701 = vcvt.s32.f32 %v669
      %v702 = vcvt.s32.f32 %v670
      %v703 = vcvt.s32.f32 %v671
      %v704 = vcvt.s32.f32 %v672
      %v705 = vcvt.s32.f32 %v673
      %v706 = vcvt.s32.f32 %v674
      %v707 = vcvt.s32.f32 %v675
      %v708 = vcvt.s32.f32 %v676
      %v709 = vcvt.s32.f32 %v677
      %v710 = vcvt.s32.f32 %v678
      %v711 = vcvt.s32.f32 %v679
      %v712 = vcvt.s32.f32 %v680
      %v713 = vcvt.s32.f32 %v681
      %v714 = vcvt.s32.f32 %v682
      %v715 = vcvt.s32.f32 %v683
      %v716 = vcvt.s32.f32 %v684
      %v717 = vcvt.s32.f32 %v685
      %v718 = vcvt.s32.f32 %v686
      %v719 = vpack.c.bf16 %v689, %v687
      %v720 = vpack.c.bf16 %v690, %v688
      %v721 = vpack.c.bf16 %v693, %v691
      %v722 = vpack.c.bf16 %v694, %v692
      %v723 = vpack.c.bf16 %v697, %v695
      %v724 = vpack.c.bf16 %v698, %v696
      %v725 = vpack.c.bf16 %v701, %v699
      %v726 = vpack.c.bf16 %v702, %v700
      %v727 = vpack.c.bf16 %v705, %v703
      %v728 = vpack.c.bf16 %v706, %v704
      %v729 = vpack.c.bf16 %v709, %v707
      %v730 = vpack.c.bf16 %v710, %v708
      %v731 = vpack.c.bf16 %v713, %v711
      %v732 = vpack.c.bf16 %v714, %v712
      %v733 = vpack.c.bf16 %v717, %v715
      %v734 = vpack.c.bf16 %v718, %v716
      %735 = vset.pattern.permute.xlu0 2
      %736 = vperm.xlu0 %735, %v396
      %v737 = vpop.permute.xlu0 %736
      %738 = vset.pattern.permute.xlu0 2
      %739 = vperm.xlu0 %738, %v397
      %v740 = vpop.permute.xlu0 %739
      %741 = vset.pattern.permute.xlu0 2
      %742 = vperm.xlu0 %741, %v398
      %v743 = vpop.permute.xlu0 %742
      %744 = vset.pattern.permute.xlu0 2
      %745 = vperm.xlu0 %744, %v399
      %v746 = vpop.permute.xlu0 %745
      %747 = vset.pattern.permute.xlu0 2
      %748 = vperm.xlu0 %747, %v400
      %v749 = vpop.permute.xlu0 %748
      %750 = vset.pattern.permute.xlu0 2
      %751 = vperm.xlu0 %750, %v401
      %v752 = vpop.permute.xlu0 %751
      %753 = vset.pattern.permute.xlu0 2
      %754 = vperm.xlu0 %753, %v402
      %v755 = vpop.permute.xlu0 %754
      %756 = vset.pattern.permute.xlu0 2
      %757 = vperm.xlu0 %756, %v403
      %v758 = vpop.permute.xlu0 %757
      %759 = vset.pattern.permute.xlu0 2
      %760 = vperm.xlu0 %759, %v404
      %v761 = vpop.permute.xlu0 %760
      %762 = vset.pattern.permute.xlu0 2
      %763 = vperm.xlu0 %762, %v405
      %v764 = vpop.permute.xlu0 %763
      %765 = vset.pattern.permute.xlu0 2
      %766 = vperm.xlu0 %765, %v406
      %v767 = vpop.permute.xlu0 %766
      %768 = vset.pattern.permute.xlu0 2
      %769 = vperm.xlu0 %768, %v407
      %v770 = vpop.permute.xlu0 %769
      %771 = vset.pattern.permute.xlu0 2
      %772 = vperm.xlu0 %771, %v408
      %v773 = vpop.permute.xlu0 %772
      %774 = vset.pattern.permute.xlu0 2
      %775 = vperm.xlu0 %774, %v409
      %v776 = vpop.permute.xlu0 %775
      %777 = vset.pattern.permute.xlu0 2
      %778 = vperm.xlu0 %777, %v410
      %v779 = vpop.permute.xlu0 %778
      %780 = vset.pattern.permute.xlu0 2
      %781 = vperm.xlu0 %780, %v411
      %v782 = vpop.permute.xlu0 %781
      %vm783 = vcmp.eq.s32.totalorder %v413, %v737
      %vm784 = vcmp.eq.s32.totalorder %v414, %v737
      %vm785 = vcmp.eq.s32.totalorder %v413, %v740
      %vm786 = vcmp.eq.s32.totalorder %v414, %v740
      %vm787 = vcmp.eq.s32.totalorder %v413, %v743
      %vm788 = vcmp.eq.s32.totalorder %v414, %v743
      %vm789 = vcmp.eq.s32.totalorder %v413, %v746
      %vm790 = vcmp.eq.s32.totalorder %v414, %v746
      %vm791 = vcmp.eq.s32.totalorder %v413, %v749
      %vm792 = vcmp.eq.s32.totalorder %v414, %v749
      %vm793 = vcmp.eq.s32.totalorder %v413, %v752
      %vm794 = vcmp.eq.s32.totalorder %v414, %v752
      %vm795 = vcmp.eq.s32.totalorder %v413, %v755
      %vm796 = vcmp.eq.s32.totalorder %v414, %v755
      %vm797 = vcmp.eq.s32.totalorder %v413, %v758
      %vm798 = vcmp.eq.s32.totalorder %v414, %v758
      %vm799 = vcmp.eq.s32.totalorder %v413, %v761
      %vm800 = vcmp.eq.s32.totalorder %v414, %v761
      %vm801 = vcmp.eq.s32.totalorder %v413, %v764
      %vm802 = vcmp.eq.s32.totalorder %v414, %v764
      %vm803 = vcmp.eq.s32.totalorder %v413, %v767
      %vm804 = vcmp.eq.s32.totalorder %v414, %v767
      %vm805 = vcmp.eq.s32.totalorder %v413, %v770
      %vm806 = vcmp.eq.s32.totalorder %v414, %v770
      %vm807 = vcmp.eq.s32.totalorder %v413, %v773
      %vm808 = vcmp.eq.s32.totalorder %v414, %v773
      %vm809 = vcmp.eq.s32.totalorder %v413, %v776
      %vm810 = vcmp.eq.s32.totalorder %v414, %v776
      %vm811 = vcmp.eq.s32.totalorder %v413, %v779
      %vm812 = vcmp.eq.s32.totalorder %v414, %v779
      %vm813 = vcmp.eq.s32.totalorder %v413, %v782
      %vm814 = vcmp.eq.s32.totalorder %v414, %v782
      %v815 = vsel %vm783, 1, 0
      %v816 = vsel %vm784, 1, 0
      %v817 = vsel %vm785, 1, 0
      %v818 = vsel %vm786, 1, 0
      %v819 = vsel %vm787, 1, 0
      %v820 = vsel %vm788, 1, 0
      %v821 = vsel %vm789, 1, 0
      %v822 = vsel %vm790, 1, 0
      %v823 = vsel %vm791, 1, 0
      %v824 = vsel %vm792, 1, 0
      %v825 = vsel %vm793, 1, 0
      %v826 = vsel %vm794, 1, 0
      %v827 = vsel %vm795, 1, 0
      %v828 = vsel %vm796, 1, 0
      %v829 = vsel %vm797, 1, 0
      %v830 = vsel %vm798, 1, 0
      %v831 = vsel %vm799, 1, 0
      %v832 = vsel %vm800, 1, 0
      %v833 = vsel %vm801, 1, 0
      %v834 = vsel %vm802, 1, 0
      %v835 = vsel %vm803, 1, 0
      %v836 = vsel %vm804, 1, 0
      %v837 = vsel %vm805, 1, 0
      %v838 = vsel %vm806, 1, 0
      %v839 = vsel %vm807, 1, 0
      %v840 = vsel %vm808, 1, 0
      %v841 = vsel %vm809, 1, 0
      %v842 = vsel %vm810, 1, 0
      %v843 = vsel %vm811, 1, 0
      %v844 = vsel %vm812, 1, 0
      %v845 = vsel %vm813, 1, 0
      %v846 = vsel %vm814, 1, 0
      %v847 = vcvt.s32.f32 %v815
      %v848 = vcvt.s32.f32 %v816
      %v849 = vcvt.s32.f32 %v817
      %v850 = vcvt.s32.f32 %v818
      %v851 = vcvt.s32.f32 %v819
      %v852 = vcvt.s32.f32 %v820
      %v853 = vcvt.s32.f32 %v821
      %v854 = vcvt.s32.f32 %v822
      %v855 = vcvt.s32.f32 %v823
      %v856 = vcvt.s32.f32 %v824
      %v857 = vcvt.s32.f32 %v825
      %v858 = vcvt.s32.f32 %v826
      %v859 = vcvt.s32.f32 %v827
      %v860 = vcvt.s32.f32 %v828
      %v861 = vcvt.s32.f32 %v829
      %v862 = vcvt.s32.f32 %v830
      %v863 = vcvt.s32.f32 %v831
      %v864 = vcvt.s32.f32 %v832
      %v865 = vcvt.s32.f32 %v833
      %v866 = vcvt.s32.f32 %v834
      %v867 = vcvt.s32.f32 %v835
      %v868 = vcvt.s32.f32 %v836
      %v869 = vcvt.s32.f32 %v837
      %v870 = vcvt.s32.f32 %v838
      %v871 = vcvt.s32.f32 %v839
      %v872 = vcvt.s32.f32 %v840
      %v873 = vcvt.s32.f32 %v841
      %v874 = vcvt.s32.f32 %v842
      %v875 = vcvt.s32.f32 %v843
      %v876 = vcvt.s32.f32 %v844
      %v877 = vcvt.s32.f32 %v845
      %v878 = vcvt.s32.f32 %v846
      %v879 = vpack.c.bf16 %v849, %v847
      %v880 = vpack.c.bf16 %v850, %v848
      %v881 = vpack.c.bf16 %v853, %v851
      %v882 = vpack.c.bf16 %v854, %v852
      %v883 = vpack.c.bf16 %v857, %v855
      %v884 = vpack.c.bf16 %v858, %v856
      %v885 = vpack.c.bf16 %v861, %v859
      %v886 = vpack.c.bf16 %v862, %v860
      %v887 = vpack.c.bf16 %v865, %v863
      %v888 = vpack.c.bf16 %v866, %v864
      %v889 = vpack.c.bf16 %v869, %v867
      %v890 = vpack.c.bf16 %v870, %v868
      %v891 = vpack.c.bf16 %v873, %v871
      %v892 = vpack.c.bf16 %v874, %v872
      %v893 = vpack.c.bf16 %v877, %v875
      %v894 = vpack.c.bf16 %v878, %v876
      %895 = vset.pattern.permute.xlu0 3
      %896 = vperm.xlu0 %895, %v396
      %v897 = vpop.permute.xlu0 %896
      %898 = vset.pattern.permute.xlu0 3
      %899 = vperm.xlu0 %898, %v397
      %v900 = vpop.permute.xlu0 %899
      %901 = vset.pattern.permute.xlu0 3
      %902 = vperm.xlu0 %901, %v398
      %v903 = vpop.permute.xlu0 %902
      %904 = vset.pattern.permute.xlu0 3
      %905 = vperm.xlu0 %904, %v399
      %v906 = vpop.permute.xlu0 %905
      %907 = vset.pattern.permute.xlu0 3
      %908 = vperm.xlu0 %907, %v400
      %v909 = vpop.permute.xlu0 %908
      %910 = vset.pattern.permute.xlu0 3
      %911 = vperm.xlu0 %910, %v401
      %v912 = vpop.permute.xlu0 %911
      %913 = vset.pattern.permute.xlu0 3
      %914 = vperm.xlu0 %913, %v402
      %v915 = vpop.permute.xlu0 %914
      %916 = vset.pattern.permute.xlu0 3
      %917 = vperm.xlu0 %916, %v403
      %v918 = vpop.permute.xlu0 %917
      %919 = vset.pattern.permute.xlu0 3
      %920 = vperm.xlu0 %919, %v404
      %v921 = vpop.permute.xlu0 %920
      %922 = vset.pattern.permute.xlu0 3
      %923 = vperm.xlu0 %922, %v405
      %v924 = vpop.permute.xlu0 %923
      %925 = vset.pattern.permute.xlu0 3
      %926 = vperm.xlu0 %925, %v406
      %v927 = vpop.permute.xlu0 %926
      %928 = vset.pattern.permute.xlu0 3
      %929 = vperm.xlu0 %928, %v407
      %v930 = vpop.permute.xlu0 %929
      %931 = vset.pattern.permute.xlu0 3
      %932 = vperm.xlu0 %931, %v408
      %v933 = vpop.permute.xlu0 %932
      %934 = vset.pattern.permute.xlu0 3
      %935 = vperm.xlu0 %934, %v409
      %v936 = vpop.permute.xlu0 %935
      %937 = vset.pattern.permute.xlu0 3
      %938 = vperm.xlu0 %937, %v410
      %v939 = vpop.permute.xlu0 %938
      %940 = vset.pattern.permute.xlu0 3
      %941 = vperm.xlu0 %940, %v411
      %v942 = vpop.permute.xlu0 %941
      %vm943 = vcmp.eq.s32.totalorder %v413, %v897
      %vm944 = vcmp.eq.s32.totalorder %v414, %v897
      %vm945 = vcmp.eq.s32.totalorder %v413, %v900
      %vm946 = vcmp.eq.s32.totalorder %v414, %v900
      %vm947 = vcmp.eq.s32.totalorder %v413, %v903
      %vm948 = vcmp.eq.s32.totalorder %v414, %v903
      %vm949 = vcmp.eq.s32.totalorder %v413, %v906
      %vm950 = vcmp.eq.s32.totalorder %v414, %v906
      %vm951 = vcmp.eq.s32.totalorder %v413, %v909
      %vm952 = vcmp.eq.s32.totalorder %v414, %v909
      %vm953 = vcmp.eq.s32.totalorder %v413, %v912
      %vm954 = vcmp.eq.s32.totalorder %v414, %v912
      %vm955 = vcmp.eq.s32.totalorder %v413, %v915
      %vm956 = vcmp.eq.s32.totalorder %v414, %v915
      %vm957 = vcmp.eq.s32.totalorder %v413, %v918
      %vm958 = vcmp.eq.s32.totalorder %v414, %v918
      %vm959 = vcmp.eq.s32.totalorder %v413, %v921
      %vm960 = vcmp.eq.s32.totalorder %v414, %v921
      %vm961 = vcmp.eq.s32.totalorder %v413, %v924
      %vm962 = vcmp.eq.s32.totalorder %v414, %v924
      %vm963 = vcmp.eq.s32.totalorder %v413, %v927
      %vm964 = vcmp.eq.s32.totalorder %v414, %v927
      %vm965 = vcmp.eq.s32.totalorder %v413, %v930
      %vm966 = vcmp.eq.s32.totalorder %v414, %v930
      %vm967 = vcmp.eq.s32.totalorder %v413, %v933
      %vm968 = vcmp.eq.s32.totalorder %v414, %v933
      %vm969 = vcmp.eq.s32.totalorder %v413, %v936
      %vm970 = vcmp.eq.s32.totalorder %v414, %v936
      %vm971 = vcmp.eq.s32.totalorder %v413, %v939
      %vm972 = vcmp.eq.s32.totalorder %v414, %v939
      %vm973 = vcmp.eq.s32.totalorder %v413, %v942
      %vm974 = vcmp.eq.s32.totalorder %v414, %v942
      %v975 = vsel %vm943, 1, 0
      %v976 = vsel %vm944, 1, 0
      %v977 = vsel %vm945, 1, 0
      %v978 = vsel %vm946, 1, 0
      %v979 = vsel %vm947, 1, 0
      %v980 = vsel %vm948, 1, 0
      %v981 = vsel %vm949, 1, 0
      %v982 = vsel %vm950, 1, 0
      %v983 = vsel %vm951, 1, 0
      %v984 = vsel %vm952, 1, 0
      %v985 = vsel %vm953, 1, 0
      %v986 = vsel %vm954, 1, 0
      %v987 = vsel %vm955, 1, 0
      %v988 = vsel %vm956, 1, 0
      %v989 = vsel %vm957, 1, 0
      %v990 = vsel %vm958, 1, 0
      %v991 = vsel %vm959, 1, 0
      %v992 = vsel %vm960, 1, 0
      %v993 = vsel %vm961, 1, 0
      %v994 = vsel %vm962, 1, 0
      %v995 = vsel %vm963, 1, 0
      %v996 = vsel %vm964, 1, 0
      %v997 = vsel %vm965, 1, 0
      %v998 = vsel %vm966, 1, 0
      %v999 = vsel %vm967, 1, 0
      %v1000 = vsel %vm968, 1, 0
      %v1001 = vsel %vm969, 1, 0
      %v1002 = vsel %vm970, 1, 0
      %v1003 = vsel %vm971, 1, 0
      %v1004 = vsel %vm972, 1, 0
      %v1005 = vsel %vm973, 1, 0
      %v1006 = vsel %vm974, 1, 0
      %v1007 = vcvt.s32.f32 %v975
      %v1008 = vcvt.s32.f32 %v976
      %v1009 = vcvt.s32.f32 %v977
      %v1010 = vcvt.s32.f32 %v978
      %v1011 = vcvt.s32.f32 %v979
      %v1012 = vcvt.s32.f32 %v980
      %v1013 = vcvt.s32.f32 %v981
      %v1014 = vcvt.s32.f32 %v982
      %v1015 = vcvt.s32.f32 %v983
      %v1016 = vcvt.s32.f32 %v984
      %v1017 = vcvt.s32.f32 %v985
      %v1018 = vcvt.s32.f32 %v986
      %v1019 = vcvt.s32.f32 %v987
      %v1020 = vcvt.s32.f32 %v988
      %v1021 = vcvt.s32.f32 %v989
      %v1022 = vcvt.s32.f32 %v990
      %v1023 = vcvt.s32.f32 %v991
      %v1024 = vcvt.s32.f32 %v992
      %v1025 = vcvt.s32.f32 %v993
      %v1026 = vcvt.s32.f32 %v994
      %v1027 = vcvt.s32.f32 %v995
      %v1028 = vcvt.s32.f32 %v996
      %v1029 = vcvt.s32.f32 %v997
      %v1030 = vcvt.s32.f32 %v998
      %v1031 = vcvt.s32.f32 %v999
      %v1032 = vcvt.s32.f32 %v1000
      %v1033 = vcvt.s32.f32 %v1001
      %v1034 = vcvt.s32.f32 %v1002
      %v1035 = vcvt.s32.f32 %v1003
      %v1036 = vcvt.s32.f32 %v1004
      %v1037 = vcvt.s32.f32 %v1005
      %v1038 = vcvt.s32.f32 %v1006
      %v1039 = vpack.c.bf16 %v1009, %v1007
      %v1040 = vpack.c.bf16 %v1010, %v1008
      %v1041 = vpack.c.bf16 %v1013, %v1011
      %v1042 = vpack.c.bf16 %v1014, %v1012
      %v1043 = vpack.c.bf16 %v1017, %v1015
      %v1044 = vpack.c.bf16 %v1018, %v1016
      %v1045 = vpack.c.bf16 %v1021, %v1019
      %v1046 = vpack.c.bf16 %v1022, %v1020
      %v1047 = vpack.c.bf16 %v1025, %v1023
      %v1048 = vpack.c.bf16 %v1026, %v1024
      %v1049 = vpack.c.bf16 %v1029, %v1027
      %v1050 = vpack.c.bf16 %v1030, %v1028
      %v1051 = vpack.c.bf16 %v1033, %v1031
      %v1052 = vpack.c.bf16 %v1034, %v1032
      %v1053 = vpack.c.bf16 %v1037, %v1035
      %v1054 = vpack.c.bf16 %v1038, %v1036
      %v1087 = vunpack.c.l.b16 %v348
      %v1088 = vunpack.c.l.b16 %v349
      %v1089 = vunpack.c.l.b16 %v350
      %v1090 = vunpack.c.l.b16 %v351
      %v1091 = vunpack.c.l.b16 %v352
      %v1092 = vunpack.c.l.b16 %v353
      %v1093 = vunpack.c.l.b16 %v354
      %v1094 = vunpack.c.l.b16 %v355
      %v1095 = vunpack.c.l.b16 %v356
      %v1096 = vunpack.c.l.b16 %v357
      %v1097 = vunpack.c.l.b16 %v358
      %v1098 = vunpack.c.l.b16 %v359
      %v1099 = vunpack.c.l.b16 %v360
      %v1100 = vunpack.c.l.b16 %v361
      %v1101 = vunpack.c.l.b16 %v362
      %v1102 = vunpack.c.l.b16 %v363
      %v1103 = vunpack.c.l.b16 %v364
      %v1104 = vunpack.c.l.b16 %v365
      %v1105 = vunpack.c.l.b16 %v366
      %v1106 = vunpack.c.l.b16 %v367
      %v1107 = vunpack.c.l.b16 %v368
      %v1108 = vunpack.c.l.b16 %v369
      %v1109 = vunpack.c.l.b16 %v370
      %v1110 = vunpack.c.l.b16 %v371
      %v1111 = vunpack.c.l.b16 %v372
      %v1112 = vunpack.c.l.b16 %v373
      %v1113 = vunpack.c.l.b16 %v374
      %v1114 = vunpack.c.l.b16 %v375
      %v1115 = vunpack.c.l.b16 %v376
      %v1116 = vunpack.c.l.b16 %v377
      %v1117 = vunpack.c.l.b16 %v378
      %v1118 = vunpack.c.l.b16 %v379
      %v1119 = vpack.c.b16 %v1088, %v1087
      %v1120 = vpack.c.b16 %v1090, %v1089
      %v1121 = vpack.c.b16 %v1092, %v1091
      %v1122 = vpack.c.b16 %v1094, %v1093
      %v1123 = vpack.c.b16 %v1096, %v1095
      %v1124 = vpack.c.b16 %v1098, %v1097
      %v1125 = vpack.c.b16 %v1100, %v1099
      %v1126 = vpack.c.b16 %v1102, %v1101
      %v1127 = vpack.c.b16 %v1104, %v1103
      %v1128 = vpack.c.b16 %v1106, %v1105
      %v1129 = vpack.c.b16 %v1108, %v1107
      %v1130 = vpack.c.b16 %v1110, %v1109
      %v1131 = vpack.c.b16 %v1112, %v1111
      %v1132 = vpack.c.b16 %v1114, %v1113
      %v1133 = vpack.c.b16 %v1116, %v1115
      %v1134 = vpack.c.b16 %v1118, %v1117
      %1151 = vmatprep.subr.bf16.mxu0 0
      %1152 = vmatpush1.bf16.msra.mxu0 %v1119
      %1153 = vmatprep.subr.bf16.mxu0 0
      %1154 = vmatpush1.bf16.msra.mxu0 %v1120
      %1155 = vmatprep.subr.bf16.mxu0 0
      %1156 = vmatpush1.bf16.msra.mxu0 %v1121
      %1157 = vmatprep.subr.bf16.mxu0 0
      %1158 = vmatpush1.bf16.msra.mxu0 %v1122
      %1159 = vmatprep.subr.bf16.mxu0 0
      %1160 = vmatpush1.bf16.msra.mxu0 %v1123
      %1161 = vmatprep.subr.bf16.mxu0 0
      %1162 = vmatpush1.bf16.msra.mxu0 %v1124
      %1163 = vmatprep.subr.bf16.mxu0 0
      %1164 = vmatpush1.bf16.msra.mxu0 %v1125
      %1165 = vmatprep.subr.bf16.mxu0 0
      %1166 = vmatpush1.bf16.msra.mxu0 %v1126
      %1167 = vmatprep.subr.bf16.mxu0 0
      %1168 = vmatpush1.bf16.msra.mxu0 %v1127
      %1169 = vmatprep.subr.bf16.mxu0 0
      %1170 = vmatpush1.bf16.msra.mxu0 %v1128
      %1171 = vmatprep.subr.bf16.mxu0 0
      %1172 = vmatpush1.bf16.msra.mxu0 %v1129
      %1173 = vmatprep.subr.bf16.mxu0 0
      %1174 = vmatpush1.bf16.msra.mxu0 %v1130
      %1175 = vmatprep.subr.bf16.mxu0 0
      %1176 = vmatpush1.bf16.msra.mxu0 %v1131
      %1177 = vmatprep.subr.bf16.mxu0 0
      %1178 = vmatpush1.bf16.msra.mxu0 %v1132
      %1179 = vmatprep.subr.bf16.mxu0 0
      %1180 = vmatpush1.bf16.msra.mxu0 %v1133
      %1181 = vmatprep.subr.bf16.mxu0 0
      %1182 = vmatpush1.bf16.msra.mxu0 %v1134
      %1183 = vmatprep.mubr.bf16.mxu0 %v560
      %1184 = vmatmul.mubr.bf16.gmra.mrb[0].mxu0 %v559
      %v1185 = vpop.f32.mrb[0].mxu0
      %v1186 = vadd.f32 0.0, %v1185
      %v1187 = vpop.f32.mrb[0].mxu0
      %v1188 = vpop.f32.mrb[0].mxu0
      %v1189 = vadd.f32 0.0, %v1188
      %v1190 = vpop.f32.mrb[0].mxu0
      %1191 = vmatprep.mubr.bf16.mxu0 %v562
      %1192 = vmatmul.mubr.bf16.gmra.mrb[0].mxu0 %v561
      %v1193 = vpop.f32.mrb[0].mxu0
      %v1194 = vadd.f32 0.0, %v1193
      %v1195 = vpop.f32.mrb[0].mxu0
      %v1196 = vpop.f32.mrb[0].mxu0
      %v1197 = vadd.f32 0.0, %v1196
      %v1198 = vpop.f32.mrb[0].mxu0
      %1199 = vmatprep.mubr.bf16.mxu0 %v564
      %1200 = vmatmul.mubr.bf16.gmra.mrb[0].mxu0 %v563
      %v1201 = vpop.f32.mrb[0].mxu0
      %v1202 = vadd.f32 0.0, %v1201
      %v1203 = vpop.f32.mrb[0].mxu0
      %v1204 = vpop.f32.mrb[0].mxu0
      %v1205 = vadd.f32 0.0, %v1204
      %v1206 = vpop.f32.mrb[0].mxu0
      %1207 = vmatprep.mubr.bf16.mxu0 %v566
      %1208 = vmatmul.mubr.bf16.gmra.mrb[0].mxu0 %v565
      %v1209 = vpop.f32.mrb[0].mxu0
      %v1210 = vadd.f32 0.0, %v1209
      %v1211 = vpop.f32.mrb[0].mxu0
      %v1212 = vpop.f32.mrb[0].mxu0
      %v1213 = vadd.f32 0.0, %v1212
      %v1214 = vpop.f32.mrb[0].mxu0
      %1215 = vmatprep.mubr.bf16.mxu0 %v568
      %1216 = vmatmul.mubr.bf16.gmra.mrb[0].mxu0 %v567
      %v1217 = vpop.f32.mrb[0].mxu0
      %v1218 = vadd.f32 0.0, %v1217
      %v1219 = vpop.f32.mrb[0].mxu0
      %v1220 = vpop.f32.mrb[0].mxu0
      %v1221 = vadd.f32 0.0, %v1220
      %v1222 = vpop.f32.mrb[0].mxu0
      %1223 = vmatprep.mubr.bf16.mxu0 %v570
      %1224 = vmatmul.mubr.bf16.gmra.mrb[0].mxu0 %v569
      %v1225 = vpop.f32.mrb[0].mxu0
      %v1226 = vadd.f32 0.0, %v1225
      %v1227 = vpop.f32.mrb[0].mxu0
      %v1228 = vpop.f32.mrb[0].mxu0
      %v1229 = vadd.f32 0.0, %v1228
      %v1230 = vpop.f32.mrb[0].mxu0
      %1231 = vmatprep.mubr.bf16.mxu0 %v572
      %1232 = vmatmul.mubr.bf16.gmra.mrb[0].mxu0 %v571
      %v1233 = vpop.f32.mrb[0].mxu0
      %v1234 = vadd.f32 0.0, %v1233
      %v1235 = vpop.f32.mrb[0].mxu0
      %v1236 = vpop.f32.mrb[0].mxu0
      %v1237 = vadd.f32 0.0, %v1236
      %v1238 = vpop.f32.mrb[0].mxu0
      %1239 = vmatprep.mubr.bf16.mxu0 %v574
      %1240 = vmatmul.mubr.bf16.gmra.mrb[0].mxu0 %v573
      %v1241 = vpop.f32.mrb[0].mxu0
      %v1242 = vadd.f32 0.0, %v1241
      %v1243 = vpop.f32.mrb[0].mxu0
      %v1244 = vpop.f32.mrb[0].mxu0
      %v1245 = vadd.f32 0.0, %v1244
      %v1246 = vpop.f32.mrb[0].mxu0
      %1247 = vmatprep.mubr.bf16.mxu0 %v720
      %1248 = vmatmul.mubr.bf16.gmra.mrb[0].mxu0 %v719
      %v1249 = vpop.f32.mrb[0].mxu0
      %v1250 = vadd.f32 0.0, %v1249
      %v1251 = vpop.f32.mrb[0].mxu0
      %v1252 = vpop.f32.mrb[0].mxu0
      %v1253 = vadd.f32 0.0, %v1252
      %v1254 = vpop.f32.mrb[0].mxu0
      %1255 = vmatprep.mubr.bf16.mxu0 %v722
      %1256 = vmatmul.mubr.bf16.gmra.mrb[0].mxu0 %v721
      %v1257 = vpop.f32.mrb[0].mxu0
      %v1258 = vadd.f32 0.0, %v1257
      %v1259 = vpop.f32.mrb[0].mxu0
      %v1260 = vpop.f32.mrb[0].mxu0
      %v1261 = vadd.f32 0.0, %v1260
      %v1262 = vpop.f32.mrb[0].mxu0
      %1263 = vmatprep.mubr.bf16.mxu0 %v724
      %1264 = vmatmul.mubr.bf16.gmra.mrb[0].mxu0 %v723
      %v1265 = vpop.f32.mrb[0].mxu0
      %v1266 = vadd.f32 0.0, %v1265
      %v1267 = vpop.f32.mrb[0].mxu0
      %v1268 = vpop.f32.mrb[0].mxu0
      %v1269 = vadd.f32 0.0, %v1268
      %v1270 = vpop.f32.mrb[0].mxu0
      %1271 = vmatprep.mubr.bf16.mxu0 %v726
      %1272 = vmatmul.mubr.bf16.gmra.mrb[0].mxu0 %v725
      %v1273 = vpop.f32.mrb[0].mxu0
      %v1274 = vadd.f32 0.0, %v1273
      %v1275 = vpop.f32.mrb[0].mxu0
      %v1276 = vpop.f32.mrb[0].mxu0
      %v1277 = vadd.f32 0.0, %v1276
      %v1278 = vpop.f32.mrb[0].mxu0
      %1279 = vmatprep.mubr.bf16.mxu0 %v728
      %1280 = vmatmul.mubr.bf16.gmra.mrb[0].mxu0 %v727
      %v1281 = vpop.f32.mrb[0].mxu0
      %v1282 = vadd.f32 0.0, %v1281
      %v1283 = vpop.f32.mrb[0].mxu0
      %v1284 = vpop.f32.mrb[0].mxu0
      %v1285 = vadd.f32 0.0, %v1284
      %v1286 = vpop.f32.mrb[0].mxu0
      %1287 = vmatprep.mubr.bf16.mxu0 %v730
      %1288 = vmatmul.mubr.bf16.gmra.mrb[0].mxu0 %v729
      %v1289 = vpop.f32.mrb[0].mxu0
      %v1290 = vadd.f32 0.0, %v1289
      %v1291 = vpop.f32.mrb[0].mxu0
      %v1292 = vpop.f32.mrb[0].mxu0
      %v1293 = vadd.f32 0.0, %v1292
      %v1294 = vpop.f32.mrb[0].mxu0
      %1295 = vmatprep.mubr.bf16.mxu0 %v732
      %1296 = vmatmul.mubr.bf16.gmra.mrb[0].mxu0 %v731
      %v1297 = vpop.f32.mrb[0].mxu0
      %v1298 = vadd.f32 0.0, %v1297
      %v1299 = vpop.f32.mrb[0].mxu0
      %v1300 = vpop.f32.mrb[0].mxu0
      %v1301 = vadd.f32 0.0, %v1300
      %v1302 = vpop.f32.mrb[0].mxu0
      %1303 = vmatprep.mubr.bf16.mxu0 %v734
      %1304 = vmatmul.mubr.bf16.gmra.mrb[0].mxu0 %v733
      %v1305 = vpop.f32.mrb[0].mxu0
      %v1306 = vadd.f32 0.0, %v1305
      %v1307 = vpop.f32.mrb[0].mxu0
      %v1308 = vpop.f32.mrb[0].mxu0
      %v1309 = vadd.f32 0.0, %v1308
      %v1310 = vpop.f32.mrb[0].mxu0
      %1311 = vmatprep.mubr.bf16.mxu0 %v880
      %1312 = vmatmul.mubr.bf16.gmra.mrb[0].mxu0 %v879
      %v1313 = vpop.f32.mrb[0].mxu0
      %v1314 = vadd.f32 0.0, %v1313
      %v1315 = vpop.f32.mrb[0].mxu0
      %v1316 = vpop.f32.mrb[0].mxu0
      %v1317 = vadd.f32 0.0, %v1316
      %v1318 = vpop.f32.mrb[0].mxu0
      %1319 = vmatprep.mubr.bf16.mxu0 %v882
      %1320 = vmatmul.mubr.bf16.gmra.mrb[0].mxu0 %v881
      %v1321 = vpop.f32.mrb[0].mxu0
      %v1322 = vadd.f32 0.0, %v1321
      %v1323 = vpop.f32.mrb[0].mxu0
      %v1324 = vpop.f32.mrb[0].mxu0
      %v1325 = vadd.f32 0.0, %v1324
      %v1326 = vpop.f32.mrb[0].mxu0
      %1327 = vmatprep.mubr.bf16.mxu0 %v884
      %1328 = vmatmul.mubr.bf16.gmra.mrb[0].mxu0 %v883
      %v1329 = vpop.f32.mrb[0].mxu0
      %v1330 = vadd.f32 0.0, %v1329
      %v1331 = vpop.f32.mrb[0].mxu0
      %v1332 = vpop.f32.mrb[0].mxu0
      %v1333 = vadd.f32 0.0, %v1332
      %v1334 = vpop.f32.mrb[0].mxu0
      %1335 = vmatprep.mubr.bf16.mxu0 %v886
      %1336 = vmatmul.mubr.bf16.gmra.mrb[0].mxu0 %v885
      %v1337 = vpop.f32.mrb[0].mxu0
      %v1338 = vadd.f32 0.0, %v1337
      %v1339 = vpop.f32.mrb[0].mxu0
      %v1340 = vpop.f32.mrb[0].mxu0
      %v1341 = vadd.f32 0.0, %v1340
      %v1342 = vpop.f32.mrb[0].mxu0
      %1343 = vmatprep.mubr.bf16.mxu0 %v888
      %1344 = vmatmul.mubr.bf16.gmra.mrb[0].mxu0 %v887
      %v1345 = vpop.f32.mrb[0].mxu0
      %v1346 = vadd.f32 0.0, %v1345
      %v1347 = vpop.f32.mrb[0].mxu0
      %v1348 = vpop.f32.mrb[0].mxu0
      %v1349 = vadd.f32 0.0, %v1348
      %v1350 = vpop.f32.mrb[0].mxu0
      %1351 = vmatprep.mubr.bf16.mxu0 %v890
      %1352 = vmatmul.mubr.bf16.gmra.mrb[0].mxu0 %v889
      %v1353 = vpop.f32.mrb[0].mxu0
      %v1354 = vadd.f32 0.0, %v1353
      %v1355 = vpop.f32.mrb[0].mxu0
      %v1356 = vpop.f32.mrb[0].mxu0
      %v1357 = vadd.f32 0.0, %v1356
      %v1358 = vpop.f32.mrb[0].mxu0
      %1359 = vmatprep.mubr.bf16.mxu0 %v892
      %1360 = vmatmul.mubr.bf16.gmra.mrb[0].mxu0 %v891
      %v1361 = vpop.f32.mrb[0].mxu0
      %v1362 = vadd.f32 0.0, %v1361
      %v1363 = vpop.f32.mrb[0].mxu0
      %v1364 = vpop.f32.mrb[0].mxu0
      %v1365 = vadd.f32 0.0, %v1364
      %v1366 = vpop.f32.mrb[0].mxu0
      %1367 = vmatprep.mubr.bf16.mxu0 %v894
      %1368 = vmatmul.mubr.bf16.gmra.mrb[0].mxu0 %v893
      %v1369 = vpop.f32.mrb[0].mxu0
      %v1370 = vadd.f32 0.0, %v1369
      %v1371 = vpop.f32.mrb[0].mxu0
      %v1372 = vpop.f32.mrb[0].mxu0
      %v1373 = vadd.f32 0.0, %v1372
      %v1374 = vpop.f32.mrb[0].mxu0
      %1375 = vmatprep.mubr.bf16.mxu0 %v1040
      %1376 = vmatmul.mubr.bf16.gmra.mrb[0].mxu0 %v1039
      %v1377 = vpop.f32.mrb[0].mxu0
      %v1378 = vadd.f32 0.0, %v1377
      %v1379 = vpop.f32.mrb[0].mxu0
      %v1380 = vpop.f32.mrb[0].mxu0
      %v1381 = vadd.f32 0.0, %v1380
      %v1382 = vpop.f32.mrb[0].mxu0
      %1383 = vmatprep.mubr.bf16.mxu0 %v1042
      %1384 = vmatmul.mubr.bf16.gmra.mrb[0].mxu0 %v1041
      %v1385 = vpop.f32.mrb[0].mxu0
      %v1386 = vadd.f32 0.0, %v1385
      %v1387 = vpop.f32.mrb[0].mxu0
      %v1388 = vpop.f32.mrb[0].mxu0
      %v1389 = vadd.f32 0.0, %v1388
      %v1390 = vpop.f32.mrb[0].mxu0
      %1391 = vmatprep.mubr.bf16.mxu0 %v1044
      %1392 = vmatmul.mubr.bf16.gmra.mrb[0].mxu0 %v1043
      %v1393 = vpop.f32.mrb[0].mxu0
      %v1394 = vadd.f32 0.0, %v1393
      %v1395 = vpop.f32.mrb[0].mxu0
      %v1396 = vpop.f32.mrb[0].mxu0
      %v1397 = vadd.f32 0.0, %v1396
      %v1398 = vpop.f32.mrb[0].mxu0
      %1399 = vmatprep.mubr.bf16.mxu0 %v1046
      %1400 = vmatmul.mubr.bf16.gmra.mrb[0].mxu0 %v1045
      %v1401 = vpop.f32.mrb[0].mxu0
      %v1402 = vadd.f32 0.0, %v1401
      %v1403 = vpop.f32.mrb[0].mxu0
      %v1404 = vpop.f32.mrb[0].mxu0
      %v1405 = vadd.f32 0.0, %v1404
      %v1406 = vpop.f32.mrb[0].mxu0
      %1407 = vmatprep.mubr.bf16.mxu0 %v1048
      %1408 = vmatmul.mubr.bf16.gmra.mrb[0].mxu0 %v1047
      %v1409 = vpop.f32.mrb[0].mxu0
      %v1410 = vadd.f32 0.0, %v1409
      %v1411 = vpop.f32.mrb[0].mxu0
      %v1412 = vpop.f32.mrb[0].mxu0
      %v1413 = vadd.f32 0.0, %v1412
      %v1414 = vpop.f32.mrb[0].mxu0
      %1415 = vmatprep.mubr.bf16.mxu0 %v1050
      %1416 = vmatmul.mubr.bf16.gmra.mrb[0].mxu0 %v1049
      %v1417 = vpop.f32.mrb[0].mxu0
      %v1418 = vadd.f32 0.0, %v1417
      %v1419 = vpop.f32.mrb[0].mxu0
      %v1420 = vpop.f32.mrb[0].mxu0
      %v1421 = vadd.f32 0.0, %v1420
      %v1422 = vpop.f32.mrb[0].mxu0
      %1423 = vmatprep.mubr.bf16.mxu0 %v1052
      %1424 = vmatmul.mubr.bf16.gmra.mrb[0].mxu0 %v1051
      %v1425 = vpop.f32.mrb[0].mxu0
      %v1426 = vadd.f32 0.0, %v1425
      %v1427 = vpop.f32.mrb[0].mxu0
      %v1428 = vpop.f32.mrb[0].mxu0
      %v1429 = vadd.f32 0.0, %v1428
      %v1430 = vpop.f32.mrb[0].mxu0
      %1431 = vmatprep.mubr.bf16.mxu0 %v1054
      %1432 = vmatmul.mubr.bf16.gmra.mrb[0].mxu0 %v1053
      %v1433 = vpop.f32.mrb[0].mxu0
      %v1434 = vadd.f32 0.0, %v1433
      %v1435 = vpop.f32.mrb[0].mxu0
      %v1436 = vpop.f32.mrb[0].mxu0
      %v1437 = vadd.f32 0.0, %v1436
      %v1438 = vpop.f32.mrb[0].mxu0
      %1439 = vdwg.mxu0
      %v1440 = vmax.f32 %v1186, %v1250
      %v1441 = vmax.f32 %v1189, %v1253
      %v1442 = vmax.f32 %v1194, %v1258
      %v1443 = vmax.f32 %v1197, %v1261
      %v1444 = vmax.f32 %v1202, %v1266
      %v1445 = vmax.f32 %v1205, %v1269
      %v1446 = vmax.f32 %v1210, %v1274
      %v1447 = vmax.f32 %v1213, %v1277
      %v1448 = vmax.f32 %v1218, %v1282
      %v1449 = vmax.f32 %v1221, %v1285
      %v1450 = vmax.f32 %v1226, %v1290
      %v1451 = vmax.f32 %v1229, %v1293
      %v1452 = vmax.f32 %v1234, %v1298
      %v1453 = vmax.f32 %v1237, %v1301
      %v1454 = vmax.f32 %v1242, %v1306
      %v1455 = vmax.f32 %v1245, %v1309
      %v1456 = vmax.f32 %v1440, %v1314
      %v1457 = vmax.f32 %v1441, %v1317
      %v1458 = vmax.f32 %v1442, %v1322
      %v1459 = vmax.f32 %v1443, %v1325
      %v1460 = vmax.f32 %v1444, %v1330
      %v1461 = vmax.f32 %v1445, %v1333
      %v1462 = vmax.f32 %v1446, %v1338
      %v1463 = vmax.f32 %v1447, %v1341
      %v1464 = vmax.f32 %v1448, %v1346
      %v1465 = vmax.f32 %v1449, %v1349
      %v1466 = vmax.f32 %v1450, %v1354
      %v1467 = vmax.f32 %v1451, %v1357
      %v1468 = vmax.f32 %v1452, %v1362
      %v1469 = vmax.f32 %v1453, %v1365
      %v1470 = vmax.f32 %v1454, %v1370
      %v1471 = vmax.f32 %v1455, %v1373
      %v1472 = vmax.f32 %v1456, %v1378
      %v1473 = vmax.f32 %v1457, %v1381
      %v1474 = vmax.f32 %v1458, %v1386
      %v1475 = vmax.f32 %v1459, %v1389
      %v1476 = vmax.f32 %v1460, %v1394
      %v1477 = vmax.f32 %v1461, %v1397
      %v1478 = vmax.f32 %v1462, %v1402
      %v1479 = vmax.f32 %v1463, %v1405
      %v1480 = vmax.f32 %v1464, %v1410
      %v1481 = vmax.f32 %v1465, %v1413
      %v1482 = vmax.f32 %v1466, %v1418
      %v1483 = vmax.f32 %v1467, %v1421
      %v1484 = vmax.f32 %v1468, %v1426
      %v1485 = vmax.f32 %v1469, %v1429
      %v1486 = vmax.f32 %v1470, %v1434
      %v1487 = vmax.f32 %v1471, %v1437
      %v1488 = vadd.f32 %v1472, %v380
      %v1489 = vadd.f32 %v1473, %v381
      %v1490 = vadd.f32 %v1474, %v382
      %v1491 = vadd.f32 %v1475, %v383
      %v1492 = vadd.f32 %v1476, %v384
      %v1493 = vadd.f32 %v1477, %v385
      %v1494 = vadd.f32 %v1478, %v386
      %v1495 = vadd.f32 %v1479, %v387
      %v1496 = vadd.f32 %v1480, %v388
      %v1497 = vadd.f32 %v1481, %v389
      %v1498 = vadd.f32 %v1482, %v390
      %v1499 = vadd.f32 %v1483, %v391
      %v1500 = vadd.f32 %v1484, %v392
      %v1501 = vadd.f32 %v1485, %v393
      %v1502 = vadd.f32 %v1486, %v394
      %v1503 = vadd.f32 %v1487, %v395
      %vm1504 = vcmp.gt.f32.partialorder %v1488, 0.0
      %vm1505 = vcmp.gt.f32.partialorder %v1489, 0.0
      %vm1506 = vcmp.gt.f32.partialorder %v1490, 0.0
      %vm1507 = vcmp.gt.f32.partialorder %v1491, 0.0
      %vm1508 = vcmp.gt.f32.partialorder %v1492, 0.0
      %vm1509 = vcmp.gt.f32.partialorder %v1493, 0.0
      %vm1510 = vcmp.gt.f32.partialorder %v1494, 0.0
      %vm1511 = vcmp.gt.f32.partialorder %v1495, 0.0
      %vm1512 = vcmp.gt.f32.partialorder %v1496, 0.0
      %vm1513 = vcmp.gt.f32.partialorder %v1497, 0.0
      %vm1514 = vcmp.gt.f32.partialorder %v1498, 0.0
      %vm1515 = vcmp.gt.f32.partialorder %v1499, 0.0
      %vm1516 = vcmp.gt.f32.partialorder %v1500, 0.0
      %vm1517 = vcmp.gt.f32.partialorder %v1501, 0.0
      %vm1518 = vcmp.gt.f32.partialorder %v1502, 0.0
      %vm1519 = vcmp.gt.f32.partialorder %v1503, 0.0
      %v1520 = vmul.f32 %v1488, 0.2
      %v1521 = vmul.f32 %v1489, 0.2
      %v1522 = vmul.f32 %v1490, 0.2
      %v1523 = vmul.f32 %v1491, 0.2
      %v1524 = vmul.f32 %v1492, 0.2
      %v1525 = vmul.f32 %v1493, 0.2
      %v1526 = vmul.f32 %v1494, 0.2
      %v1527 = vmul.f32 %v1495, 0.2
      %v1528 = vmul.f32 %v1496, 0.2
      %v1529 = vmul.f32 %v1497, 0.2
      %v1530 = vmul.f32 %v1498, 0.2
      %v1531 = vmul.f32 %v1499, 0.2
      %v1532 = vmul.f32 %v1500, 0.2
      %v1533 = vmul.f32 %v1501, 0.2
      %v1534 = vmul.f32 %v1502, 0.2
      %v1535 = vmul.f32 %v1503, 0.2
      %v1536 = vsel %vm1504, %v1488, %v1520
      %v1537 = vsel %vm1505, %v1489, %v1521
      %v1538 = vsel %vm1506, %v1490, %v1522
      %v1539 = vsel %vm1507, %v1491, %v1523
      %v1540 = vsel %vm1508, %v1492, %v1524
      %v1541 = vsel %vm1509, %v1493, %v1525
      %v1542 = vsel %vm1510, %v1494, %v1526
      %v1543 = vsel %vm1511, %v1495, %v1527
      %v1544 = vsel %vm1512, %v1496, %v1528
      %v1545 = vsel %vm1513, %v1497, %v1529
      %v1546 = vsel %vm1514, %v1498, %v1530
      %v1547 = vsel %vm1515, %v1499, %v1531
      %v1548 = vsel %vm1516, %v1500, %v1532
      %v1549 = vsel %vm1517, %v1501, %v1533
      %v1550 = vsel %vm1518, %v1502, %v1534
      %v1551 = vsel %vm1519, %v1503, %v1535
      %v1552 = vpack.c.bf16 %v1537, %v1536
      %v1553 = vpack.c.bf16 %v1539, %v1538
      %v1554 = vpack.c.bf16 %v1541, %v1540
      %v1555 = vpack.c.bf16 %v1543, %v1542
      %v1556 = vpack.c.bf16 %v1545, %v1544
      %v1557 = vpack.c.bf16 %v1547, %v1546
      %v1558 = vpack.c.bf16 %v1549, %v1548
      %v1559 = vpack.c.bf16 %v1551, %v1550
      %v1560 = vld [vmem:[%s3] sm:$0xf]
      %v1561 = vld [vmem:[%s3 + $0x4] sm:$0xf]
      %v1562 = vld [vmem:[%s3 + $0x8] sm:$0xf]
      %v1563 = vld [vmem:[%s3 + $0xc] sm:$0xf]
      %v1564 = vld [vmem:[%s3 + $0x10] sm:$0xf]
      %v1565 = vld [vmem:[%s3 + $0x14] sm:$0xf]
      %v1566 = vld [vmem:[%s3 + $0x18] sm:$0xf]
      %v1567 = vld [vmem:[%s3 + $0x1c] sm:$0xf]
      %v1568 = vld [vmem:[%s3 + $0x20] sm:$0xf]
      %v1569 = vld [vmem:[%s3 + $0x24] sm:$0xf]
      %v1570 = vld [vmem:[%s3 + $0x28] sm:$0xf]
      %v1571 = vld [vmem:[%s3 + $0x2c] sm:$0xf]
      %v1572 = vld [vmem:[%s3 + $0x30] sm:$0xf]
      %v1573 = vld [vmem:[%s3 + $0x34] sm:$0xf]
      %v1574 = vld [vmem:[%s3 + $0x38] sm:$0xf]
      %v1575 = vld [vmem:[%s3 + $0x3c] sm:$0xf]
      %v1592 = vunpack.c.l.b16 %v1560
      %v1593 = vunpack.c.l.b16 %v1561
      %v1594 = vunpack.c.l.b16 %v1562
      %v1595 = vunpack.c.l.b16 %v1563
      %v1596 = vunpack.c.l.b16 %v1564
      %v1597 = vunpack.c.l.b16 %v1565
      %v1598 = vunpack.c.l.b16 %v1566
      %v1599 = vunpack.c.l.b16 %v1567
      %v1600 = vunpack.c.l.b16 %v1568
      %v1601 = vunpack.c.l.b16 %v1569
      %v1602 = vunpack.c.l.b16 %v1570
      %v1603 = vunpack.c.l.b16 %v1571
      %v1604 = vunpack.c.l.b16 %v1572
      %v1605 = vunpack.c.l.b16 %v1573
      %v1606 = vunpack.c.l.b16 %v1574
      %v1607 = vunpack.c.l.b16 %v1575
      %v1608 = vpack.c.b16 %v1593, %v1592
      %v1609 = vpack.c.b16 %v1595, %v1594
      %v1610 = vpack.c.b16 %v1597, %v1596
      %v1611 = vpack.c.b16 %v1599, %v1598
      %v1612 = vpack.c.b16 %v1601, %v1600
      %v1613 = vpack.c.b16 %v1603, %v1602
      %v1614 = vpack.c.b16 %v1605, %v1604
      %v1615 = vpack.c.b16 %v1607, %v1606
      %1624 = vmatprep.subr.bf16.mxu0 0
      %1625 = vmatpush1.bf16.msra.mxu0 %v1608
      %1626 = vmatprep.subr.bf16.mxu0 0
      %1627 = vmatpush1.bf16.msra.mxu0 %v1609
      %1628 = vmatprep.subr.bf16.mxu0 0
      %1629 = vmatpush1.bf16.msra.mxu0 %v1610
      %1630 = vmatprep.subr.bf16.mxu0 0
      %1631 = vmatpush1.bf16.msra.mxu0 %v1611
      %1632 = vmatprep.subr.bf16.mxu0 0
      %1633 = vmatpush1.bf16.msra.mxu0 %v1612
      %1634 = vmatprep.subr.bf16.mxu0 0
      %1635 = vmatpush1.bf16.msra.mxu0 %v1613
      %1636 = vmatprep.subr.bf16.mxu0 0
      %1637 = vmatpush1.bf16.msra.mxu0 %v1614
      %1638 = vmatprep.subr.bf16.mxu0 0
      %1639 = vmatpush1.bf16.msra.mxu0 %v1615
      %1640 = vmatprep.subr.bf16.mxu0 0
      %1641 = vmatpush1.bf16.msra.mxu0 0
      %1642 = vmatprep.subr.bf16.mxu0 0
      %1643 = vmatpush1.bf16.msra.mxu0 0
      %1644 = vmatprep.subr.bf16.mxu0 0
      %1645 = vmatpush1.bf16.msra.mxu0 0
      %1646 = vmatprep.subr.bf16.mxu0 0
      %1647 = vmatpush1.bf16.msra.mxu0 0
      %1648 = vmatprep.subr.bf16.mxu0 0
      %1649 = vmatpush1.bf16.msra.mxu0 0
      %1650 = vmatprep.subr.bf16.mxu0 0
      %1651 = vmatpush1.bf16.msra.mxu0 0
      %1652 = vmatprep.subr.bf16.mxu0 0
      %1653 = vmatpush1.bf16.msra.mxu0 0
      %1654 = vmatprep.subr.bf16.mxu0 0
      %1655 = vmatpush1.bf16.msra.mxu0 0
      %1656 = vmatprep.mubr.bf16.mxu0 0
      %1657 = vmatmul.mubr.bf16.gmra.mrb[0].mxu0 %v1552
      %v1658 = vpop.f32.mrb[0].mxu0
      %v1659 = vadd.f32 0.0, %v1658
      %v1660 = vpop.f32.mrb[0].mxu0
      %v1661 = vpop.f32.mrb[0].mxu0
      %v1662 = vadd.f32 0.0, %v1661
      %v1663 = vpop.f32.mrb[0].mxu0
      %1664 = vmatprep.mubr.bf16.mxu0 0
      %1665 = vmatmul.mubr.bf16.gmra.mrb[0].mxu0 %v1553
      %v1666 = vpop.f32.mrb[0].mxu0
      %v1667 = vadd.f32 0.0, %v1666
      %v1668 = vpop.f32.mrb[0].mxu0
      %v1669 = vpop.f32.mrb[0].mxu0
      %v1670 = vadd.f32 0.0, %v1669
      %v1671 = vpop.f32.mrb[0].mxu0
      %1672 = vmatprep.mubr.bf16.mxu0 0
      %1673 = vmatmul.mubr.bf16.gmra.mrb[0].mxu0 %v1554
      %v1674 = vpop.f32.mrb[0].mxu0
      %v1675 = vadd.f32 0.0, %v1674
      %v1676 = vpop.f32.mrb[0].mxu0
      %v1677 = vpop.f32.mrb[0].mxu0
      %v1678 = vadd.f32 0.0, %v1677
      %v1679 = vpop.f32.mrb[0].mxu0
      %1680 = vmatprep.mubr.bf16.mxu0 0
      %1681 = vmatmul.mubr.bf16.gmra.mrb[0].mxu0 %v1555
      %v1682 = vpop.f32.mrb[0].mxu0
      %v1683 = vadd.f32 0.0, %v1682
      %v1684 = vpop.f32.mrb[0].mxu0
      %v1685 = vpop.f32.mrb[0].mxu0
      %v1686 = vadd.f32 0.0, %v1685
      %v1687 = vpop.f32.mrb[0].mxu0
      %1688 = vmatprep.mubr.bf16.mxu0 0
      %1689 = vmatmul.mubr.bf16.gmra.mrb[0].mxu0 %v1556
      %v1690 = vpop.f32.mrb[0].mxu0
      %v1691 = vadd.f32 0.0, %v1690
      %v1692 = vpop.f32.mrb[0].mxu0
      %v1693 = vpop.f32.mrb[0].mxu0
      %v1694 = vadd.f32 0.0, %v1693
      %v1695 = vpop.f32.mrb[0].mxu0
      %1696 = vmatprep.mubr.bf16.mxu0 0
      %1697 = vmatmul.mubr.bf16.gmra.mrb[0].mxu0 %v1557
      %v1698 = vpop.f32.mrb[0].mxu0
      %v1699 = vadd.f32 0.0, %v1698
      %v1700 = vpop.f32.mrb[0].mxu0
      %v1701 = vpop.f32.mrb[0].mxu0
      %v1702 = vadd.f32 0.0, %v1701
      %v1703 = vpop.f32.mrb[0].mxu0
      %1704 = vmatprep.mubr.bf16.mxu0 0
      %1705 = vmatmul.mubr.bf16.gmra.mrb[0].mxu0 %v1558
      %v1706 = vpop.f32.mrb[0].mxu0
      %v1707 = vadd.f32 0.0, %v1706
      %v1708 = vpop.f32.mrb[0].mxu0
      %v1709 = vpop.f32.mrb[0].mxu0
      %v1710 = vadd.f32 0.0, %v1709
      %v1711 = vpop.f32.mrb[0].mxu0
      %1712 = vmatprep.mubr.bf16.mxu0 0
      %1713 = vmatmul.mubr.bf16.gmra.mrb[0].mxu0 %v1559
      %v1714 = vpop.f32.mrb[0].mxu0
      %v1715 = vadd.f32 0.0, %v1714
      %v1716 = vpop.f32.mrb[0].mxu0
      %v1717 = vpop.f32.mrb[0].mxu0
      %v1718 = vadd.f32 0.0, %v1717
      %v1719 = vpop.f32.mrb[0].mxu0
      %1720 = vdwg.mxu0
      %v1721 = vld [vmem:[%s4] sm:$0x1]
      %v1723 = vlaneseq
      %v1724 = vshrl.u32 %v1723, 7
      %v1725 = vsub.s32 0, %v1724
      %v1726 = vrot.slane %v1721, %v1725
      %v1728 = vmul.f32 %v1659, %v1726
      %v1729 = vmul.f32 %v1662, %v1726
      %v1730 = vmul.f32 %v1667, %v1726
      %v1731 = vmul.f32 %v1670, %v1726
      %v1732 = vmul.f32 %v1675, %v1726
      %v1733 = vmul.f32 %v1678, %v1726
      %v1734 = vmul.f32 %v1683, %v1726
      %v1735 = vmul.f32 %v1686, %v1726
      %v1736 = vmul.f32 %v1691, %v1726
      %v1737 = vmul.f32 %v1694, %v1726
      %v1738 = vmul.f32 %v1699, %v1726
      %v1739 = vmul.f32 %v1702, %v1726
      %v1740 = vmul.f32 %v1707, %v1726
      %v1741 = vmul.f32 %v1710, %v1726
      %v1742 = vmul.f32 %v1715, %v1726
      %v1743 = vmul.f32 %v1718, %v1726
      %v1744 = vld [vmem:[%s5] sm:$0x1]
      %v1746 = vlaneseq
      %v1747 = vshrl.u32 %v1746, 7
      %v1748 = vsub.s32 0, %v1747
      %v1749 = vrot.slane %v1744, %v1748
      %v1751 = vadd.f32 %v1728, %v1749
      %v1752 = vadd.f32 %v1729, %v1749
      %v1753 = vadd.f32 %v1730, %v1749
      %v1754 = vadd.f32 %v1731, %v1749
      %v1755 = vadd.f32 %v1732, %v1749
      %v1756 = vadd.f32 %v1733, %v1749
      %v1757 = vadd.f32 %v1734, %v1749
      %v1758 = vadd.f32 %v1735, %v1749
      %v1759 = vadd.f32 %v1736, %v1749
      %v1760 = vadd.f32 %v1737, %v1749
      %v1761 = vadd.f32 %v1738, %v1749
      %v1762 = vadd.f32 %v1739, %v1749
      %v1763 = vadd.f32 %v1740, %v1749
      %v1764 = vadd.f32 %v1741, %v1749
      %v1765 = vadd.f32 %v1742, %v1749
      %v1766 = vadd.f32 %v1743, %v1749
      %vm1767 = vcmp.gt.f32.partialorder %v1751, 0.0
      %vm1768 = vcmp.gt.f32.partialorder %v1752, 0.0
      %vm1769 = vcmp.gt.f32.partialorder %v1753, 0.0
      %vm1770 = vcmp.gt.f32.partialorder %v1754, 0.0
      %vm1771 = vcmp.gt.f32.partialorder %v1755, 0.0
      %vm1772 = vcmp.gt.f32.partialorder %v1756, 0.0
      %vm1773 = vcmp.gt.f32.partialorder %v1757, 0.0
      %vm1774 = vcmp.gt.f32.partialorder %v1758, 0.0
      %vm1775 = vcmp.gt.f32.partialorder %v1759, 0.0
      %vm1776 = vcmp.gt.f32.partialorder %v1760, 0.0
      %vm1777 = vcmp.gt.f32.partialorder %v1761, 0.0
      %vm1778 = vcmp.gt.f32.partialorder %v1762, 0.0
      %vm1779 = vcmp.gt.f32.partialorder %v1763, 0.0
      %vm1780 = vcmp.gt.f32.partialorder %v1764, 0.0
      %vm1781 = vcmp.gt.f32.partialorder %v1765, 0.0
      %vm1782 = vcmp.gt.f32.partialorder %v1766, 0.0
      %v1783 = vmul.f32 %v1751, 0.2
      %v1784 = vmul.f32 %v1752, 0.2
      %v1785 = vmul.f32 %v1753, 0.2
      %v1786 = vmul.f32 %v1754, 0.2
      %v1787 = vmul.f32 %v1755, 0.2
      %v1788 = vmul.f32 %v1756, 0.2
      %v1789 = vmul.f32 %v1757, 0.2
      %v1790 = vmul.f32 %v1758, 0.2
      %v1791 = vmul.f32 %v1759, 0.2
      %v1792 = vmul.f32 %v1760, 0.2
      %v1793 = vmul.f32 %v1761, 0.2
      %v1794 = vmul.f32 %v1762, 0.2
      %v1795 = vmul.f32 %v1763, 0.2
      %v1796 = vmul.f32 %v1764, 0.2
      %v1797 = vmul.f32 %v1765, 0.2
      %v1798 = vmul.f32 %v1766, 0.2
      %v1799 = vsel %vm1767, %v1751, %v1783
      %v1800 = vsel %vm1768, %v1752, %v1784
      %v1801 = vsel %vm1769, %v1753, %v1785
      %v1802 = vsel %vm1770, %v1754, %v1786
      %v1803 = vsel %vm1771, %v1755, %v1787
      %v1804 = vsel %vm1772, %v1756, %v1788
      %v1805 = vsel %vm1773, %v1757, %v1789
      %v1806 = vsel %vm1774, %v1758, %v1790
      %v1807 = vsel %vm1775, %v1759, %v1791
      %v1808 = vsel %vm1776, %v1760, %v1792
      %v1809 = vsel %vm1777, %v1761, %v1793
      %v1810 = vsel %vm1778, %v1762, %v1794
      %v1811 = vsel %vm1779, %v1763, %v1795
      %v1812 = vsel %vm1780, %v1764, %v1796
      %v1813 = vsel %vm1781, %v1765, %v1797
      %v1814 = vsel %vm1782, %v1766, %v1798
      %1815 = vst [vmem:[%s345] sm:$0xff] %v1799
      %1816 = vst [vmem:[%s345 + $0x8] sm:$0xff] %v1800
      %1817 = vst [vmem:[%s345 + $0x10] sm:$0xff] %v1801
      %1818 = vst [vmem:[%s345 + $0x18] sm:$0xff] %v1802
      %1819 = vst [vmem:[%s345 + $0x20] sm:$0xff] %v1803
      %1820 = vst [vmem:[%s345 + $0x28] sm:$0xff] %v1804
      %1821 = vst [vmem:[%s345 + $0x30] sm:$0xff] %v1805
      %1822 = vst [vmem:[%s345 + $0x38] sm:$0xff] %v1806
      %1823 = vst [vmem:[%s345 + $0x40] sm:$0xff] %v1807
      %1824 = vst [vmem:[%s345 + $0x48] sm:$0xff] %v1808
      %1825 = vst [vmem:[%s345 + $0x50] sm:$0xff] %v1809
      %1826 = vst [vmem:[%s345 + $0x58] sm:$0xff] %v1810
      %1827 = vst [vmem:[%s345 + $0x60] sm:$0xff] %v1811
      %1828 = vst [vmem:[%s345 + $0x68] sm:$0xff] %v1812
      %1829 = vst [vmem:[%s345 + $0x70] sm:$0xff] %v1813
      %1830 = vst [vmem:[%s345 + $0x78] sm:$0xff] %v1814
      %s1831 = smul.u32 16, %s22
      %p1832 = scmp.lt.s32.totalorder %s21, 1
      %s1833 = scalar_select %p1832, %s21, 1
      %p1834 = scmp.lt.s32.totalorder %s1831, 31
      %s1835 = scalar_select %p1834, %s1831, 31
      %s1836 = smul.addr %s1833, 32
      %s1837 = sadd.s32 %s1835, %s1836
      %s1838 = smul.addr %s1837, 8
      %s1839 = scalar_lea.vmem %s6, %s1838
      // Predicated region
      $region45: #{_lambda_.1} parent=43 // pred_check
        %p1840 = pneg %p194
      $region46: #{_lambda_.1} parent=43 // pred_check_branch
        %1842 = sbr.rel (%p1840) target = $region48
      $region47: #{_lambda_.1} parent=43 // pred_region
        %s1843 = smul.u32 16, %s22
      $region48: #{_lambda_.1} parent=43 // pred_fallthru
        _
    $region44: #{_lambda_.1} parent=5 // pred_fallthru
      _
    %p1844 = scmp.le.s32.totalorder 2, %s12
    // Predicated region
    $region49: #{_lambda_.1} parent=5 // pred_check
      %p1845 = pneg %p1844
    $region50: #{_lambda_.1} parent=5 // pred_check_branch
      %1847 = sbr.rel (%p1845) target = $region52
    $region51: #{_lambda_.1} parent=5 // pred_region
      %s1848 = ssub.s32 %s12, 2
      // Predicated region
      $region53: #{_lambda_.1} parent=51 // pred_check
        %p1849 = pneg %p200
      $region54: #{_lambda_.1} parent=51 // pred_check_branch
        %1851 = sbr.rel (%p1849) target = $region56
      $region55: #{_lambda_.1} parent=51 // pred_region
        %s1852 = smul.u32 16, %s24
        %p1853 = scmp.lt.s32.totalorder %s23, 1
        %s1854 = scalar_select %p1853, %s23, 1
        %p1855 = scmp.lt.s32.totalorder %s1852, 31
        %s1856 = scalar_select %p1855, %s1852, 31
        %s1857 = smul.addr %s1854, 32
        %s1858 = sadd.s32 %s1856, %s1857
        %s1859 = smul.addr %s1858, 8
        %s1860 = scalar_lea.vmem %s6, %s1859
      $region56: #{_lambda_.1} parent=51 // pred_fallthru
        _
    $region52: #{_lambda_.1} parent=5 // pred_fallthru
      _
  $region6: #{_lambda_.1} parent=0 // loop_footer
    %s16 = sadd.s32 1, %s12
  $region7: #{_lambda_.1} parent=0 // loop_footer_branch
    %11 = sbr.rel target = $region3
  $region8: #{_lambda_.1} parent=0 // loop_exit
    _

</llo_original>
